<compile_context>
chip_gen: v7x
topology: tpu7x:2x2x1
jax: 0.10.0
libtpu: 0.0.40
codegen_flags: <defaults>
</compile_context>

<pallas_src>
import numpy as np
import jax
import jax.numpy as jnp
from jax.experimental import pallas as pl
from jax.experimental.pallas import tpu as pltpu


# ----------------------------- mask construction (host-side, matches PyTorch) ----

def get_data_degrees(n):
    # torch.arange(1, n + 1)
    return np.arange(1, n + 1, dtype=np.int64)


def hidden_mask_and_degrees(in_degrees, out_features, data_features):
    """MaskedLinear.get_mask_and_degrees with is_output=False, random_mask=False."""
    max_ = max(1, data_features - 1)
    min_ = min(1, data_features - 1)
    out_degrees = np.arange(out_features, dtype=np.int64) % max_ + min_
    mask = (out_degrees[:, None] >= in_degrees[None, :]).astype(np.float32)  # [out, in]
    return mask, out_degrees


# ----------------------------- Pallas kernel --------------------------------

def mrb_kernel(x_ref,
               wm1_ref, b1_ref,
               wm2_ref, b2_ref,
               wm3_ref, b3_ref,
               o_ref):
    # x_ref/o_ref: [bm, I]; wmK_ref: [in, out] (mask folded in, pre-transposed);
    # bK_ref: [1, out]. All three dots accumulate in f32 on the MXU.
    x = x_ref[...]

    h = jnp.maximum(x, 0.0)
    h = jnp.dot(h, wm1_ref[...], preferred_element_type=jnp.float32) + b1_ref[...]

    h = jnp.maximum(h, 0.0)
    h = jnp.dot(h, wm2_ref[...], preferred_element_type=jnp.float32) + b2_ref[...]

    h = jnp.maximum(h, 0.0)
    h = jnp.dot(h, wm3_ref[...], preferred_element_type=jnp.float32) + b3_ref[...]

    o_ref[...] = (h + x).astype(o_ref.dtype)


# ----------------------------- parameter preprocessing (one-time) ------------

def _round_up(v, m):
    return (v + m - 1) // m * m


def fold_params(params, dtype=jnp.float32):
    """One-time host-side preprocessing (do NOT redo per forward call):
    fold the constant mask into the weights, transpose to [in, out] so the kernel
    does h @ WM directly on the MXU, and zero-pad the *hidden* dims to lane
    multiples. The external feature dim I is left unpadded so x / out need no
    host-side padding copy. Returns device arrays ready for the kernel.
    (Casting to bf16 here would ~3x MXU throughput; f32 kept for 1e-5 tolerance.)"""
    (W1, M1, b1), (W2, M2, b2), (W3, M3, b3) = params
    I = int(W1.shape[1])
    H = int(W1.shape[0])               # == 2*I
    out_dim = int(W3.shape[0])         # == 2*O
    assert out_dim == I, "residual add requires 2*O == I"

    LANE = 128
    H_pad = _round_up(H, LANE)

    def fold(W, M, b, in_pad, out_pad):
        wm = (np.asarray(W, np.float32) * np.asarray(M, np.float32)).T  # [in, out]
        wm_p = np.zeros((in_pad, out_pad), np.float32)
        wm_p[: wm.shape[0], : wm.shape[1]] = wm
        b_np = np.asarray(b, np.float32)
        b_p = np.zeros((1, out_pad), np.float32)
        b_p[0, : b_np.shape[0]] = b_np
        return jnp.asarray(wm_p, dtype), jnp.asarray(b_p, dtype)

    wm1, bb1 = fold(W1, M1, b1, I, H_pad)          # [I, H_pad]
    wm2, bb2 = fold(W2, M2, b2, H_pad, H_pad)      # [H_pad, H_pad]
    wm3, bb3 = fold(W3, M3, b3, H_pad, I)          # [H_pad, I]
    return (wm1, bb1, wm2, bb2, wm3, bb3)


# ----------------------------- wrapper ---------------------------------------

def masked_residual_block_linear(x, folded, *, bm=512):
    """x: [B, I] f32. folded: output of fold_params (device-resident, pre-folded)."""
    B, I = x.shape
    wm1, bb1, wm2, bb2, wm3, bb3 = folded
    H_pad = wm1.shape[1]
    assert wm1.shape[0] == I and wm3.shape[1] == I

    # Batch tile: large (amortizes ~0.35us/step overhead, fills 256-wide MXU passes),
    # but keep >= ~4 grid steps when the batch allows so the 'parallel' axis shards
    # across v7x's 2 TensorCores and prefetch/writeback overlaps compute.
    bm = max(8, min(bm, _round_up(B, 8)))
    if pl.cdiv(B, bm) < 4 and B >= 2 * 128:
        bm = min(max(128, _round_up(pl.cdiv(B, 4), 8)), _round_up(B, 8))
    grid_m = pl.cdiv(B, bm)

    itemsize = 4
    weight_bytes = sum(int(a.size) * int(a.dtype.itemsize)
                       for a in (wm1, bb1, wm2, bb2, wm3, bb3))   # single-buffered
    tile_bytes = 2 * 2 * bm * I * int(x.dtype.itemsize)           # double-buffered x & out
    scratch_bytes = 4 * bm * max(H_pad, I) * itemsize             # in-kernel h temporaries
    need = weight_bytes + tile_bytes + scratch_bytes

    try:
        phys = int(pltpu.get_tpu_info().vmem_capacity_bytes)
    except Exception:
        phys = 64 << 20   # conservative: v7x per-TensorCore VMEM

    if weight_bytes + tile_bytes + (2 << 20) > phys:
        # TODO(synk): stream wm2 (the dominant H_pad x H_pad term) from HBM with
        # memory_space=pl.ANY + pltpu.emit_pipeline instead of keeping it resident.
        raise NotImplementedError("resident weights exceed VMEM; wm2 streaming not implemented")

    # Explicit scoped-VMEM limit: the 16/32 MiB defaults are far below physical and
    # would break the resident-weight scheme / force worse schedules.
    vmem_limit = int(1.5 * need) + (4 << 20)
    vmem_limit = max(vmem_limit, 32 << 20)
    vmem_limit = min(vmem_limit, phys - (8 << 20), 100 << 20)
    vmem_limit = max(vmem_limit, 16 << 20)

    def run(weight_pipeline_mode):
        if weight_pipeline_mode is None:
            def resident(a):
                return pl.BlockSpec(a.shape, lambda i: (0, 0))
        else:
            def resident(a):
                # Constant index_map => weights stay in VMEM across all batch steps;
                # single-buffering halves their VMEM footprint vs default Buffered(2).
                return pl.BlockSpec(a.shape, lambda i: (0, 0),
                                    pipeline_mode=weight_pipeline_mode)
        return pl.pallas_call(
            mrb_kernel,
            out_shape=jax.ShapeDtypeStruct((B, I), x.dtype),
            grid=(grid_m,),
            in_specs=[
                pl.BlockSpec((bm, I), lambda i: (i, 0)),     # x tile (no host padding)
                resident(wm1), resident(bb1),
                resident(wm2), resident(bb2),
                resident(wm3), resident(bb3),
            ],
            out_specs=pl.BlockSpec((bm, I), lambda i: (i, 0)),  # partial last block masked
            compiler_params=pltpu.CompilerParams(
                dimension_semantics=("parallel",),
                vmem_limit_bytes=int(vmem_limit)),
        )(x, wm1, bb1, wm2, bb2, wm3, bb3)

    try:
        out = jax.block_until_ready(run(pl.Buffered(1)))
    except Exception:
        # Fallback if this JAX build rejects Buffered(1) on a resident input.
        out = run(None)
    return out


# ----------------------------- parameter setup (deterministic) --------------

def build_params(key, I, O, D):
    """Builds PyTorch-layout (W, M, b) for the three MaskedLinear layers."""
    k = jax.random.split(key, 6)

    def linear_init(kw, kb, in_f, out_f):
        bound = 1.0 / np.sqrt(in_f)
        W = jax.random.uniform(kw, (out_f, in_f), jnp.float32, -bound, bound)
        b = jax.random.uniform(kb, (out_f,), jnp.float32, -bound, bound)
        return np.asarray(W), np.asarray(b)

    # linear1: in_degrees = degrees(I), out = 2I
    W1, b1 = linear_init(k[0], k[1], I, 2 * I)
    M1, _ = hidden_mask_and_degrees(get_data_degrees(I), 2 * I, D)
    # linear2: in_degrees = degrees(2I), out = 2I (fresh arange, as in the PyTorch module)
    W2, b2 = linear_init(k[2], k[3], 2 * I, 2 * I)
    M2, _ = hidden_mask_and_degrees(get_data_degrees(2 * I), 2 * I, D)
    # linear3: in_degrees = degrees(2I), out = 2O
    W3, b3 = linear_init(k[4], k[5], 2 * I, 2 * O)
    M3, _ = hidden_mask_and_degrees(get_data_degrees(2 * I), 2 * O, D)

    return ((W1, M1, b1), (W2, M2, b2), (W3, M3, b3))


def reference_forward(x, params):
    h = x
    for (W, M, b) in params:
        h = jnp.maximum(h, 0.0)
        h = h @ (jnp.asarray(W) * jnp.asarray(M)).T + jnp.asarray(b)
    return h + x


# ----------------------------- main ------------------------------------------

if __name__ == "__main__":
    I, O, D = 8, 4, 8          # residual requires 2*O == I
    B = 256                    # two full 128-row MXU tiles -> 2 parallel grid steps

    key = jax.random.PRNGKey(0)
    kx, kp = jax.random.split(key)
    x = jax.random.normal(kx, (B, I), dtype=jnp.float32)
    params = build_params(kp, I, O, D)

    folded = fold_params(params)   # one-time: fold mask, transpose, pad, upload

    out = masked_residual_block_linear(x, folded, bm=512)
    out = jax.block_until_ready(out)

    ref = reference_forward(x, params)
    np.testing.assert_allclose(np.asarray(out), np.asarray(ref), rtol=1e-5, atol=1e-5)

    print("KERNEL_OK")
</pallas_src>

<mosaic_0001>
module attributes {stable_mosaic.version = 11 : i64} {
  func.func @mrb_kernel(%arg0: i32, %arg1: memref<128x8xf32, #tpu.memory_space<vmem>>, %arg2: memref<8x128xf32, #tpu.memory_space<vmem>>, %arg3: memref<1x128xf32, #tpu.memory_space<vmem>>, %arg4: memref<128x128xf32, #tpu.memory_space<vmem>>, %arg5: memref<1x128xf32, #tpu.memory_space<vmem>>, %arg6: memref<128x8xf32, #tpu.memory_space<vmem>>, %arg7: memref<1x8xf32, #tpu.memory_space<vmem>>, %arg8: memref<128x8xf32, #tpu.memory_space<vmem>>) attributes {dimension_semantics = [#tpu.dimension_semantics<parallel>], iteration_bounds = array<i64: 2>, scalar_prefetch = 0 : i64, scratch_operands = 0 : i64, tpu.core_type = #tpu.core_type<tc>, window_params = [{transform_indices = @transform_0, window_bounds = array<i64: 128, 8>}, {pipeline_mode = #tpu.pipeline_mode<synchronous>, transform_indices = @transform_1, window_bounds = array<i64: 8, 128>}, {pipeline_mode = #tpu.pipeline_mode<synchronous>, transform_indices = @transform_2, window_bounds = array<i64: 1, 128>}, {pipeline_mode = #tpu.pipeline_mode<synchronous>, transform_indices = @transform_3, window_bounds = array<i64: 128, 128>}, {pipeline_mode = #tpu.pipeline_mode<synchronous>, transform_indices = @transform_4, window_bounds = array<i64: 1, 128>}, {pipeline_mode = #tpu.pipeline_mode<synchronous>, transform_indices = @transform_5, window_bounds = array<i64: 128, 8>}, {pipeline_mode = #tpu.pipeline_mode<synchronous>, transform_indices = @transform_6, window_bounds = array<i64: 1, 8>}, {transform_indices = @transform_7, window_bounds = array<i64: 128, 8>}]} {
    %c0 = arith.constant 0 : index
    %c0_0 = arith.constant 0 : index
    %0 = vector.load %arg1[%c0, %c0_0] : memref<128x8xf32, #tpu.memory_space<vmem>>, vector<128x8xf32>
    %cst = arith.constant 0.000000e+00 : f32
    %1 = vector.broadcast %cst : f32 to vector<128x8xf32>
    %2 = arith.maximumf %0, %1 : vector<128x8xf32>
    %c0_1 = arith.constant 0 : index
    %c0_2 = arith.constant 0 : index
    %3 = vector.load %arg2[%c0_1, %c0_2] : memref<8x128xf32, #tpu.memory_space<vmem>>, vector<8x128xf32>
    %cst_3 = arith.constant dense<0.000000e+00> : vector<128x128xf32>
    %4 = tpu.matmul %2, %3, %cst_3 {dimension_numbers = #tpu.dot_dimension_numbers<[1], [0], [0], [1], [0, 0, 1, 1], [], []>} : vector<128x8xf32>, vector<8x128xf32>, vector<128x128xf32> -> vector<128x128xf32>
    %c0_4 = arith.constant 0 : index
    %c0_5 = arith.constant 0 : index
    %5 = vector.load %arg3[%c0_4, %c0_5] : memref<1x128xf32, #tpu.memory_space<vmem>>, vector<1x128xf32>
    %6 = vector.broadcast %5 : vector<1x128xf32> to vector<128x128xf32>
    %7 = arith.addf %4, %6 : vector<128x128xf32>
    %cst_6 = arith.constant 0.000000e+00 : f32
    %8 = vector.broadcast %cst_6 : f32 to vector<128x128xf32>
    %9 = arith.maximumf %7, %8 : vector<128x128xf32>
    %c0_7 = arith.constant 0 : index
    %c0_8 = arith.constant 0 : index
    %10 = vector.load %arg4[%c0_7, %c0_8] : memref<128x128xf32, #tpu.memory_space<vmem>>, vector<128x128xf32>
    %cst_9 = arith.constant dense<0.000000e+00> : vector<128x128xf32>
    %11 = tpu.matmul %9, %10, %cst_9 {dimension_numbers = #tpu.dot_dimension_numbers<[1], [0], [0], [1], [0, 0, 1, 1], [], []>} : vector<128x128xf32>, vector<128x128xf32>, vector<128x128xf32> -> vector<128x128xf32>
    %c0_10 = arith.constant 0 : index
    %c0_11 = arith.constant 0 : index
    %12 = vector.load %arg5[%c0_10, %c0_11] : memref<1x128xf32, #tpu.memory_space<vmem>>, vector<1x128xf32>
    %13 = vector.broadcast %12 : vector<1x128xf32> to vector<128x128xf32>
    %14 = arith.addf %11, %13 : vector<128x128xf32>
    %cst_12 = arith.constant 0.000000e+00 : f32
    %15 = vector.broadcast %cst_12 : f32 to vector<128x128xf32>
    %16 = arith.maximumf %14, %15 : vector<128x128xf32>
    %c0_13 = arith.constant 0 : index
    %c0_14 = arith.constant 0 : index
    %17 = vector.load %arg6[%c0_13, %c0_14] : memref<128x8xf32, #tpu.memory_space<vmem>>, vector<128x8xf32>
    %cst_15 = arith.constant dense<0.000000e+00> : vector<128x8xf32>
    %18 = tpu.matmul %16, %17, %cst_15 {dimension_numbers = #tpu.dot_dimension_numbers<[1], [0], [0], [1], [0, 0, 1, 1], [], []>} : vector<128x128xf32>, vector<128x8xf32>, vector<128x8xf32> -> vector<128x8xf32>
    %c0_16 = arith.constant 0 : index
    %c0_17 = arith.constant 0 : index
    %19 = vector.load %arg7[%c0_16, %c0_17] : memref<1x8xf32, #tpu.memory_space<vmem>>, vector<1x8xf32>
    %20 = vector.broadcast %19 : vector<1x8xf32> to vector<128x8xf32>
    %21 = arith.addf %18, %20 : vector<128x8xf32>
    %22 = arith.addf %21, %0 : vector<128x8xf32>
    %c0_18 = arith.constant 0 : index
    %c0_19 = arith.constant 0 : index
    %23 = vector.load %arg8[%c0_18, %c0_19] : memref<128x8xf32, #tpu.memory_space<vmem>>, vector<128x8xf32>
    tpu.vector_store %arg8[%c0_18, %c0_19], %22 {strides = array<i32>} : memref<128x8xf32, #tpu.memory_space<vmem>>, vector<128x8xf32>,
    return
  }
  func.func @transform_0(%arg0: i32) -> (i32, i32) {
    %c0_i32 = arith.constant 0 : i32
    %c0_i32_0 = arith.constant 0 : i32
    return %arg0, %c0_i32 : i32, i32
  }
  func.func @transform_1(%arg0: i32) -> (i32, i32) {
    %c0_i32 = arith.constant 0 : i32
    %c0_i32_0 = arith.constant 0 : i32
    %c0_i32_1 = arith.constant 0 : i32
    return %c0_i32, %c0_i32_0 : i32, i32
  }
  func.func @transform_2(%arg0: i32) -> (i32, i32) {
    %c0_i32 = arith.constant 0 : i32
    %c0_i32_0 = arith.constant 0 : i32
    %c0_i32_1 = arith.constant 0 : i32
    return %c0_i32, %c0_i32_0 : i32, i32
  }
  func.func @transform_3(%arg0: i32) -> (i32, i32) {
    %c0_i32 = arith.constant 0 : i32
    %c0_i32_0 = arith.constant 0 : i32
    %c0_i32_1 = arith.constant 0 : i32
    return %c0_i32, %c0_i32_0 : i32, i32
  }
  func.func @transform_4(%arg0: i32) -> (i32, i32) {
    %c0_i32 = arith.constant 0 : i32
    %c0_i32_0 = arith.constant 0 : i32
    %c0_i32_1 = arith.constant 0 : i32
    return %c0_i32, %c0_i32_0 : i32, i32
  }
  func.func @transform_5(%arg0: i32) -> (i32, i32) {
    %c0_i32 = arith.constant 0 : i32
    %c0_i32_0 = arith.constant 0 : i32
    %c0_i32_1 = arith.constant 0 : i32
    return %c0_i32, %c0_i32_0 : i32, i32
  }
  func.func @transform_6(%arg0: i32) -> (i32, i32) {
    %c0_i32 = arith.constant 0 : i32
    %c0_i32_0 = arith.constant 0 : i32
    %c0_i32_1 = arith.constant 0 : i32
    return %c0_i32, %c0_i32_0 : i32, i32
  }
  func.func @transform_7(%arg0: i32) -> (i32, i32) {
    %c0_i32 = arith.constant 0 : i32
    %c0_i32_0 = arith.constant 0 : i32
    return %arg0, %c0_i32 : i32, i32
  }
}

module attributes {stable_mosaic.version = 11 : i64} {
  func.func @mrb_kernel(%arg0: i32, %arg1: memref<128x8xf32, #tpu.memory_space<vmem>>, %arg2: memref<8x128xf32, #tpu.memory_space<vmem>>, %arg3: memref<1x128xf32, #tpu.memory_space<vmem>>, %arg4: memref<128x128xf32, #tpu.memory_space<vmem>>, %arg5: memref<1x128xf32, #tpu.memory_space<vmem>>, %arg6: memref<128x8xf32, #tpu.memory_space<vmem>>, %arg7: memref<1x8xf32, #tpu.memory_space<vmem>>, %arg8: memref<128x8xf32, #tpu.memory_space<vmem>>) attributes {dimension_semantics = [#tpu.dimension_semantics<parallel>], iteration_bounds = array<i64: 2>, scalar_prefetch = 0 : i64, scratch_operands = 0 : i64, tpu.core_type = #tpu.core_type<tc>, window_params = [{transform_indices = @transform_0, window_bounds = array<i64: 128, 8>}, {pipeline_mode = #tpu.pipeline_mode<synchronous>, transform_indices = @transform_1, window_bounds = array<i64: 8, 128>}, {pipeline_mode = #tpu.pipeline_mode<synchronous>, transform_indices = @transform_2, window_bounds = array<i64: 1, 128>}, {pipeline_mode = #tpu.pipeline_mode<synchronous>, transform_indices = @transform_3, window_bounds = array<i64: 128, 128>}, {pipeline_mode = #tpu.pipeline_mode<synchronous>, transform_indices = @transform_4, window_bounds = array<i64: 1, 128>}, {pipeline_mode = #tpu.pipeline_mode<synchronous>, transform_indices = @transform_5, window_bounds = array<i64: 128, 8>}, {pipeline_mode = #tpu.pipeline_mode<synchronous>, transform_indices = @transform_6, window_bounds = array<i64: 1, 8>}, {transform_indices = @transform_7, window_bounds = array<i64: 128, 8>}]} {
    %c0 = arith.constant 0 : index
    %c0_0 = arith.constant 0 : index
    %0 = vector.load %arg1[%c0, %c0_0] : memref<128x8xf32, #tpu.memory_space<vmem>>, vector<128x8xf32>
    %cst = arith.constant 0.000000e+00 : f32
    %1 = vector.broadcast %cst : f32 to vector<128x8xf32>
    %2 = arith.maximumf %0, %1 : vector<128x8xf32>
    %c0_1 = arith.constant 0 : index
    %c0_2 = arith.constant 0 : index
    %3 = vector.load %arg2[%c0_1, %c0_2] : memref<8x128xf32, #tpu.memory_space<vmem>>, vector<8x128xf32>
    %cst_3 = arith.constant dense<0.000000e+00> : vector<128x128xf32>
    %4 = tpu.matmul %2, %3, %cst_3 {dimension_numbers = #tpu.dot_dimension_numbers<[1], [0], [0], [1], [0, 0, 1, 1], [], []>} : vector<128x8xf32>, vector<8x128xf32>, vector<128x128xf32> -> vector<128x128xf32>
    %c0_4 = arith.constant 0 : index
    %c0_5 = arith.constant 0 : index
    %5 = vector.load %arg3[%c0_4, %c0_5] : memref<1x128xf32, #tpu.memory_space<vmem>>, vector<1x128xf32>
    %6 = vector.broadcast %5 : vector<1x128xf32> to vector<128x128xf32>
    %7 = arith.addf %4, %6 : vector<128x128xf32>
    %cst_6 = arith.constant 0.000000e+00 : f32
    %8 = vector.broadcast %cst_6 : f32 to vector<128x128xf32>
    %9 = arith.maximumf %7, %8 : vector<128x128xf32>
    %c0_7 = arith.constant 0 : index
    %c0_8 = arith.constant 0 : index
    %10 = vector.load %arg4[%c0_7, %c0_8] : memref<128x128xf32, #tpu.memory_space<vmem>>, vector<128x128xf32>
    %cst_9 = arith.constant dense<0.000000e+00> : vector<128x128xf32>
    %11 = tpu.matmul %9, %10, %cst_9 {dimension_numbers = #tpu.dot_dimension_numbers<[1], [0], [0], [1], [0, 0, 1, 1], [], []>} : vector<128x128xf32>, vector<128x128xf32>, vector<128x128xf32> -> vector<128x128xf32>
    %c0_10 = arith.constant 0 : index
    %c0_11 = arith.constant 0 : index
    %12 = vector.load %arg5[%c0_10, %c0_11] : memref<1x128xf32, #tpu.memory_space<vmem>>, vector<1x128xf32>
    %13 = vector.broadcast %12 : vector<1x128xf32> to vector<128x128xf32>
    %14 = arith.addf %11, %13 : vector<128x128xf32>
    %cst_12 = arith.constant 0.000000e+00 : f32
    %15 = vector.broadcast %cst_12 : f32 to vector<128x128xf32>
    %16 = arith.maximumf %14, %15 : vector<128x128xf32>
    %c0_13 = arith.constant 0 : index
    %c0_14 = arith.constant 0 : index
    %17 = vector.load %arg6[%c0_13, %c0_14] : memref<128x8xf32, #tpu.memory_space<vmem>>, vector<128x8xf32>
    %cst_15 = arith.constant dense<0.000000e+00> : vector<128x8xf32>
    %18 = tpu.matmul %16, %17, %cst_15 {dimension_numbers = #tpu.dot_dimension_numbers<[1], [0], [0], [1], [0, 0, 1, 1], [], []>} : vector<128x128xf32>, vector<128x8xf32>, vector<128x8xf32> -> vector<128x8xf32>
    %c0_16 = arith.constant 0 : index
    %c0_17 = arith.constant 0 : index
    %19 = vector.load %arg7[%c0_16, %c0_17] : memref<1x8xf32, #tpu.memory_space<vmem>>, vector<1x8xf32>
    %20 = vector.broadcast %19 : vector<1x8xf32> to vector<128x8xf32>
    %21 = arith.addf %18, %20 : vector<128x8xf32>
    %22 = arith.addf %21, %0 : vector<128x8xf32>
    %c0_18 = arith.constant 0 : index
    %c0_19 = arith.constant 0 : index
    %23 = vector.load %arg8[%c0_18, %c0_19] : memref<128x8xf32, #tpu.memory_space<vmem>>, vector<128x8xf32>
    tpu.vector_store %arg8[%c0_18, %c0_19], %22 {strides = array<i32>} : memref<128x8xf32, #tpu.memory_space<vmem>>, vector<128x8xf32>,
    return
  }
  func.func @transform_0(%arg0: i32) -> (i32, i32) {
    %c0_i32 = arith.constant 0 : i32
    %c0_i32_0 = arith.constant 0 : i32
    return %arg0, %c0_i32 : i32, i32
  }
  func.func @transform_1(%arg0: i32) -> (i32, i32) {
    %c0_i32 = arith.constant 0 : i32
    %c0_i32_0 = arith.constant 0 : i32
    %c0_i32_1 = arith.constant 0 : i32
    return %c0_i32, %c0_i32_0 : i32, i32
  }
  func.func @transform_2(%arg0: i32) -> (i32, i32) {
    %c0_i32 = arith.constant 0 : i32
    %c0_i32_0 = arith.constant 0 : i32
    %c0_i32_1 = arith.constant 0 : i32
    return %c0_i32, %c0_i32_0 : i32, i32
  }
  func.func @transform_3(%arg0: i32) -> (i32, i32) {
    %c0_i32 = arith.constant 0 : i32
    %c0_i32_0 = arith.constant 0 : i32
    %c0_i32_1 = arith.constant 0 : i32
    return %c0_i32, %c0_i32_0 : i32, i32
  }
  func.func @transform_4(%arg0: i32) -> (i32, i32) {
    %c0_i32 = arith.constant 0 : i32
    %c0_i32_0 = arith.constant 0 : i32
    %c0_i32_1 = arith.constant 0 : i32
    return %c0_i32, %c0_i32_0 : i32, i32
  }
  func.func @transform_5(%arg0: i32) -> (i32, i32) {
    %c0_i32 = arith.constant 0 : i32
    %c0_i32_0 = arith.constant 0 : i32
    %c0_i32_1 = arith.constant 0 : i32
    return %c0_i32, %c0_i32_0 : i32, i32
  }
  func.func @transform_6(%arg0: i32) -> (i32, i32) {
    %c0_i32 = arith.constant 0 : i32
    %c0_i32_0 = arith.constant 0 : i32
    %c0_i32_1 = arith.constant 0 : i32
    return %c0_i32, %c0_i32_0 : i32, i32
  }
  func.func @transform_7(%arg0: i32) -> (i32, i32) {
    %c0_i32 = arith.constant 0 : i32
    %c0_i32_0 = arith.constant 0 : i32
    return %arg0, %c0_i32 : i32, i32
  }
}

</mosaic_0001>

<llo_original>
// kernel: tpu_custom_call.1
$region0: #{tpu_custom_call.1}
  #allocation0 [shape = 'u32[]', space=smem, size = 0x4, offset = 0x4, fixed_abs, tag = 'smem constant byte address 0x4 - core index']
  #allocation1 [shape = 'u32[144,128]{1,0:T(1,128)}', space=vmem, size = 0x12000, scoped, tag = 'internal scratch']
  %s0 = inlined_call_operand.vmem [shape: f32[256,8], index: 0, kind: input, shape index: {}]
  %s1 = inlined_call_operand.vmem [shape: f32[8,128], index: 1, kind: input, shape index: {}]
  %s2 = inlined_call_operand.vmem [shape: f32[1,128], index: 2, kind: input, shape index: {}]
  %s3 = inlined_call_operand.vmem [shape: f32[128,128], index: 3, kind: input, shape index: {}]
  %s4 = inlined_call_operand.vmem [shape: f32[1,128], index: 4, kind: input, shape index: {}]
  %s5 = inlined_call_operand.vmem [shape: f32[128,8], index: 5, kind: input, shape index: {}]
  %s6 = inlined_call_operand.vmem [shape: f32[1,8], index: 6, kind: input, shape index: {}]
  %s7 = inlined_call_operand.vmem [shape: f32[256,8], index: 7, kind: output, shape index: {}]
  %s8 = sld [smem:[#allocation0]]
  $region61: #{tpu_custom_call.1} parent=0
    _
  %s10 = ssub.s32 1, %s8
  %s11 = scalar_select 0, %s10, %s8
  loop: start=0, step=1, limit=4
  $region2: #{tpu_custom_call.1} parent=0 // loop_pre_header
    _
  $region3: #{tpu_custom_call.1} parent=0 // loop_header
    %s13 = sphi 0, %s17
    %p14 = scmp.ge.s32.totalorder %s13, 4
    %s23 = sphi 0, %s25
    %s26 = sphi 0, %s23
    %s27 = sphi 0, %s26
    %s43 = sphi 0, %s27
    %s47 = sphi 0, %s47
    %s49 = sphi 0, %s47
    %s50 = sphi 0, %s49
    %s64 = sphi 0, %s50
    %s68 = sphi 0, %s68
    %s70 = sphi 0, %s68
    %s71 = sphi 0, %s70
    %s85 = sphi 0, %s71
    %s89 = sphi 0, %s89
    %s91 = sphi 0, %s89
    %s92 = sphi 0, %s91
    %s106 = sphi 0, %s92
    %s110 = sphi 0, %s110
    %s112 = sphi 0, %s110
    %s113 = sphi 0, %s112
    %s127 = sphi 0, %s113
    %s131 = sphi 0, %s131
    %s133 = sphi 0, %s131
    %s134 = sphi 0, %s133
    %s148 = sphi 0, %s134
    %s152 = sphi 0, %s152
    %s154 = sphi 0, %s152
    %s155 = sphi 0, %s154
    %s169 = sphi 0, %s155
    %s175 = sphi 0, %s177
    %s178 = sphi 0, %s175
    %s179 = sphi 0, %s178
    %s195 = sphi 0, %s179
  $region4: #{tpu_custom_call.1} parent=0 // loop_header_branch
    %16 = sbr.rel (%p14) target = $region8
  $region5: #{tpu_custom_call.1} parent=0 // loop_body
    %s18 = ssub.s32 %s13, 1
    %s19 = ssub.s32 %s13, 2
    %s20 = sadd.s32 %s13, 1
    %s21 = ssub.s32 %s13, %s20
    %p22 = scmp.eq.s32.totalorder %s21, 0
    %s24 = sadd.s32 %s23, 1
    %s25 = scalar_select %p22, %s23, %s24
    %p28 = pneg %p22
    %p29 = scmp.eq.s32.totalorder %s13, 1
    %p30 = por %p28, %p29
    %p31 = scmp.ne.s32.totalorder %s23, %s26
    %p32 = scmp.eq.s32.totalorder %s13, 0
    %p33 = por %p31, %p32
    %p34 = scmp.ne.s32.totalorder %s23, %s26
    %p35 = scmp.eq.s32.totalorder %s18, 1
    %p36 = por %p34, %p35
    %p37 = scmp.ne.s32.totalorder %s26, %s27
    %p38 = scmp.eq.s32.totalorder %s18, 0
    %p39 = por %p37, %p38
    %p40 = scmp.ne.s32.totalorder %s26, %s27
    %p41 = scmp.eq.s32.totalorder %s19, 1
    %p42 = por %p40, %p41
    %p44 = scmp.ne.s32.totalorder %s27, %s43
    %p45 = scmp.eq.s32.totalorder %s19, 0
    %p46 = por %p44, %p45
    %s48 = sadd.s32 %s47, 1
    %p51 = scmp.eq.s32.totalorder %s13, 1
    %p52 = scmp.ne.s32.totalorder %s47, %s49
    %p53 = scmp.eq.s32.totalorder %s13, 0
    %p54 = por %p52, %p53
    %p55 = scmp.ne.s32.totalorder %s47, %s49
    %p56 = scmp.eq.s32.totalorder %s18, 1
    %p57 = por %p55, %p56
    %p58 = scmp.ne.s32.totalorder %s49, %s50
    %p59 = scmp.eq.s32.totalorder %s18, 0
    %p60 = por %p58, %p59
    %p61 = scmp.ne.s32.totalorder %s49, %s50
    %p62 = scmp.eq.s32.totalorder %s19, 1
    %p63 = por %p61, %p62
    %p65 = scmp.ne.s32.totalorder %s50, %s64
    %p66 = scmp.eq.s32.totalorder %s19, 0
    %p67 = por %p65, %p66
    %s69 = sadd.s32 %s68, 1
    %p72 = scmp.eq.s32.totalorder %s13, 1
    %p73 = scmp.ne.s32.totalorder %s68, %s70
    %p74 = scmp.eq.s32.totalorder %s13, 0
    %p75 = por %p73, %p74
    %p76 = scmp.ne.s32.totalorder %s68, %s70
    %p77 = scmp.eq.s32.totalorder %s18, 1
    %p78 = por %p76, %p77
    %p79 = scmp.ne.s32.totalorder %s70, %s71
    %p80 = scmp.eq.s32.totalorder %s18, 0
    %p81 = por %p79, %p80
    %p82 = scmp.ne.s32.totalorder %s70, %s71
    %p83 = scmp.eq.s32.totalorder %s19, 1
    %p84 = por %p82, %p83
    %p86 = scmp.ne.s32.totalorder %s71, %s85
    %p87 = scmp.eq.s32.totalorder %s19, 0
    %p88 = por %p86, %p87
    %s90 = sadd.s32 %s89, 1
    %p93 = scmp.eq.s32.totalorder %s13, 1
    %p94 = scmp.ne.s32.totalorder %s89, %s91
    %p95 = scmp.eq.s32.totalorder %s13, 0
    %p96 = por %p94, %p95
    %p97 = scmp.ne.s32.totalorder %s89, %s91
    %p98 = scmp.eq.s32.totalorder %s18, 1
    %p99 = por %p97, %p98
    %p100 = scmp.ne.s32.totalorder %s91, %s92
    %p101 = scmp.eq.s32.totalorder %s18, 0
    %p102 = por %p100, %p101
    %p103 = scmp.ne.s32.totalorder %s91, %s92
    %p104 = scmp.eq.s32.totalorder %s19, 1
    %p105 = por %p103, %p104
    %p107 = scmp.ne.s32.totalorder %s92, %s106
    %p108 = scmp.eq.s32.totalorder %s19, 0
    %p109 = por %p107, %p108
    %s111 = sadd.s32 %s110, 1
    %p114 = scmp.eq.s32.totalorder %s13, 1
    %p115 = scmp.ne.s32.totalorder %s110, %s112
    %p116 = scmp.eq.s32.totalorder %s13, 0
    %p117 = por %p115, %p116
    %p118 = scmp.ne.s32.totalorder %s110, %s112
    %p119 = scmp.eq.s32.totalorder %s18, 1
    %p120 = por %p118, %p119
    %p121 = scmp.ne.s32.totalorder %s112, %s113
    %p122 = scmp.eq.s32.totalorder %s18, 0
    %p123 = por %p121, %p122
    %p124 = scmp.ne.s32.totalorder %s112, %s113
    %p125 = scmp.eq.s32.totalorder %s19, 1
    %p126 = por %p124, %p125
    %p128 = scmp.ne.s32.totalorder %s113, %s127
    %p129 = scmp.eq.s32.totalorder %s19, 0
    %p130 = por %p128, %p129
    %s132 = sadd.s32 %s131, 1
    %p135 = scmp.eq.s32.totalorder %s13, 1
    %p136 = scmp.ne.s32.totalorder %s131, %s133
    %p137 = scmp.eq.s32.totalorder %s13, 0
    %p138 = por %p136, %p137
    %p139 = scmp.ne.s32.totalorder %s131, %s133
    %p140 = scmp.eq.s32.totalorder %s18, 1
    %p141 = por %p139, %p140
    %p142 = scmp.ne.s32.totalorder %s133, %s134
    %p143 = scmp.eq.s32.totalorder %s18, 0
    %p144 = por %p142, %p143
    %p145 = scmp.ne.s32.totalorder %s133, %s134
    %p146 = scmp.eq.s32.totalorder %s19, 1
    %p147 = por %p145, %p146
    %p149 = scmp.ne.s32.totalorder %s134, %s148
    %p150 = scmp.eq.s32.totalorder %s19, 0
    %p151 = por %p149, %p150
    %s153 = sadd.s32 %s152, 1
    %p156 = scmp.eq.s32.totalorder %s13, 1
    %p157 = scmp.ne.s32.totalorder %s152, %s154
    %p158 = scmp.eq.s32.totalorder %s13, 0
    %p159 = por %p157, %p158
    %p160 = scmp.ne.s32.totalorder %s152, %s154
    %p161 = scmp.eq.s32.totalorder %s18, 1
    %p162 = por %p160, %p161
    %p163 = scmp.ne.s32.totalorder %s154, %s155
    %p164 = scmp.eq.s32.totalorder %s18, 0
    %p165 = por %p163, %p164
    %p166 = scmp.ne.s32.totalorder %s154, %s155
    %p167 = scmp.eq.s32.totalorder %s19, 1
    %p168 = por %p166, %p167
    %p170 = scmp.ne.s32.totalorder %s155, %s169
    %p171 = scmp.eq.s32.totalorder %s19, 0
    %p172 = por %p170, %p171
    %s173 = ssub.s32 %s13, %s20
    %p174 = scmp.eq.s32.totalorder %s173, 0
    %s176 = sadd.s32 %s175, 1
    %s177 = scalar_select %p174, %s175, %s176
    %p180 = pneg %p174
    %p181 = scmp.eq.s32.totalorder %s13, 1
    %p182 = por %p180, %p181
    %p183 = scmp.ne.s32.totalorder %s175, %s178
    %p184 = scmp.eq.s32.totalorder %s13, 0
    %p185 = por %p183, %p184
    %p186 = scmp.ne.s32.totalorder %s175, %s178
    %p187 = scmp.eq.s32.totalorder %s18, 1
    %p188 = por %p186, %p187
    %p189 = scmp.ne.s32.totalorder %s178, %s179
    %p190 = scmp.eq.s32.totalorder %s18, 0
    %p191 = por %p189, %p190
    %p192 = scmp.ne.s32.totalorder %s178, %s179
    %p193 = scmp.eq.s32.totalorder %s19, 1
    %p194 = por %p192, %p193
    %p196 = scmp.ne.s32.totalorder %s179, %s195
    %p197 = scmp.eq.s32.totalorder %s19, 0
    %p198 = por %p196, %p197
    %p199 = scmp.le.s32.totalorder 1, %s13
    %p200 = scmp.lt.s32.totalorder %s13, 3
    %p201 = pnand %p199, %p200
    %p202 = pneg %p201
    // Predicated region
    $region9: #{tpu_custom_call.1} parent=5 // pred_check
      _
    $region10: #{tpu_custom_call.1} parent=5 // pred_check_branch
      %204 = sbr.rel (%p201) target = $region12
    $region11: #{tpu_custom_call.1} parent=5 // pred_region
      %s205 = ssub.s32 %s13, 1
      // Predicated region
      $region13: #{tpu_custom_call.1} parent=11 // pred_check
        %p206 = pneg %p60
      $region14: #{tpu_custom_call.1} parent=11 // pred_check_branch
        %208 = sbr.rel (%p206) target = $region16
      $region15: #{tpu_custom_call.1} parent=11 // pred_region
        _
      $region16: #{tpu_custom_call.1} parent=11 // pred_fallthru
        _
      // Predicated region
      $region17: #{tpu_custom_call.1} parent=11 // pred_check
        %p209 = pneg %p81
      $region18: #{tpu_custom_call.1} parent=11 // pred_check_branch
        %211 = sbr.rel (%p209) target = $region20
      $region19: #{tpu_custom_call.1} parent=11 // pred_region
        _
      $region20: #{tpu_custom_call.1} parent=11 // pred_fallthru
        _
      // Predicated region
      $region21: #{tpu_custom_call.1} parent=11 // pred_check
        %p212 = pneg %p102
      $region22: #{tpu_custom_call.1} parent=11 // pred_check_branch
        %214 = sbr.rel (%p212) target = $region24
      $region23: #{tpu_custom_call.1} parent=11 // pred_region
        _
      $region24: #{tpu_custom_call.1} parent=11 // pred_fallthru
        _
      // Predicated region
      $region25: #{tpu_custom_call.1} parent=11 // pred_check
        %p215 = pneg %p123
      $region26: #{tpu_custom_call.1} parent=11 // pred_check_branch
        %217 = sbr.rel (%p215) target = $region28
      $region27: #{tpu_custom_call.1} parent=11 // pred_region
        _
      $region28: #{tpu_custom_call.1} parent=11 // pred_fallthru
        _
      // Predicated region
      $region29: #{tpu_custom_call.1} parent=11 // pred_check
        %p218 = pneg %p144
      $region30: #{tpu_custom_call.1} parent=11 // pred_check_branch
        %220 = sbr.rel (%p218) target = $region32
      $region31: #{tpu_custom_call.1} parent=11 // pred_region
        _
      $region32: #{tpu_custom_call.1} parent=11 // pred_fallthru
        _
      // Predicated region
      $region33: #{tpu_custom_call.1} parent=11 // pred_check
        %p221 = pneg %p165
      $region34: #{tpu_custom_call.1} parent=11 // pred_check_branch
        %223 = sbr.rel (%p221) target = $region36
      $region35: #{tpu_custom_call.1} parent=11 // pred_region
        _
      $region36: #{tpu_custom_call.1} parent=11 // pred_fallthru
        _
    $region12: #{tpu_custom_call.1} parent=5 // pred_fallthru
      _
    %p224 = scmp.lt.s32.totalorder %s13, 2
    // Predicated region
    $region37: #{tpu_custom_call.1} parent=5 // pred_check
      %p225 = pneg %p224
    $region38: #{tpu_custom_call.1} parent=5 // pred_check_branch
      %227 = sbr.rel (%p225) target = $region40
    $region39: #{tpu_custom_call.1} parent=5 // pred_region
      // Predicated region
      $region41: #{tpu_custom_call.1} parent=39 // pred_check
        %p228 = pneg %p33
      $region42: #{tpu_custom_call.1} parent=39 // pred_check_branch
        %230 = sbr.rel (%p228) target = $region44
      $region43: #{tpu_custom_call.1} parent=39 // pred_region
        %s231 = smul.u32 16, %s13
        %p232 = scmp.lt.s32.totalorder %s231, 31
        %s233 = scalar_select %p232, %s231, 31
        %s234 = smul.addr %s233, 8
        %s235 = scalar_lea.vmem %s0, %s234
        %s236 = smul.u32 16, %s13
      $region44: #{tpu_custom_call.1} parent=39 // pred_fallthru
        _
    $region40: #{tpu_custom_call.1} parent=5 // pred_fallthru
      _
    %p237 = scmp.le.s32.totalorder 1, %s13
    %p238 = scmp.lt.s32.totalorder %s13, 3
    %p239 = pnand %p237, %p238
    %p240 = pneg %p239
    // Predicated region
    $region45: #{tpu_custom_call.1} parent=5 // pred_check
      _
    $region46: #{tpu_custom_call.1} parent=5 // pred_check_branch
      %242 = sbr.rel (%p239) target = $region48
    $region47: #{tpu_custom_call.1} parent=5 // pred_region
      %s243 = ssub.s32 %s13, 1
      %s244 = smul.u32 16, %s18
      %p245 = scmp.lt.s32.totalorder %s244, 31
      %s246 = scalar_select %p245, %s244, 31
      %s247 = smul.addr %s246, 8
      %s248 = scalar_lea.vmem %s0, %s247
      %p249 = pneg %p39
      %p250 = pneg %p36
      %p251 = pneg %p60
      %p252 = pneg %p57
      %p253 = pneg %p81
      %p254 = pneg %p78
      %p255 = pneg %p102
      %p256 = pneg %p99
      %p257 = pneg %p123
      %p258 = pneg %p120
      %p259 = pneg %p144
      %p260 = pneg %p141
      %p261 = pneg %p165
      %p262 = pneg %p162
      %p263 = pneg %p191
      %p264 = pneg %p188
      %s265 = smul.u32 16, %s18
      %p266 = scmp.lt.s32.totalorder %s265, 31
      %s267 = scalar_select %p266, %s265, 31
      %s268 = smul.addr %s267, 8
      %s269 = scalar_lea.vmem %s7, %s268
      %s270 = smul.u32 16, %s18
      %p271 = scmp.lt.s32.totalorder %s270, 31
      %s272 = scalar_select %p271, %s270, 31
      %s273 = smul.addr %s272, 8
      %s274 = scalar_lea.vmem %s0, %s273
      %s275 = smul.u32 16, %s18
      %s276 = smul.u32 16, %s18
      %p277 = scmp.lt.s32.totalorder %s276, 31
      %s278 = scalar_select %p277, %s276, 31
      %s279 = smul.addr %s278, 8
      %s280 = scalar_lea.vmem %s7, %s279
      %s281 = smul.u32 16, %s18
      %v282 = vld [vmem:[%s274] sm:$0xff]
      %v283 = vld [vmem:[%s274 + $0x8] sm:$0xff]
      %v284 = vld [vmem:[%s274 + $0x10] sm:$0xff]
      %v285 = vld [vmem:[%s274 + $0x18] sm:$0xff]
      %v286 = vld [vmem:[%s274 + $0x20] sm:$0xff]
      %v287 = vld [vmem:[%s274 + $0x28] sm:$0xff]
      %v288 = vld [vmem:[%s274 + $0x30] sm:$0xff]
      %v289 = vld [vmem:[%s274 + $0x38] sm:$0xff]
      %v290 = vld [vmem:[%s274 + $0x40] sm:$0xff]
      %v291 = vld [vmem:[%s274 + $0x48] sm:$0xff]
      %v292 = vld [vmem:[%s274 + $0x50] sm:$0xff]
      %v293 = vld [vmem:[%s274 + $0x58] sm:$0xff]
      %v294 = vld [vmem:[%s274 + $0x60] sm:$0xff]
      %v295 = vld [vmem:[%s274 + $0x68] sm:$0xff]
      %v296 = vld [vmem:[%s274 + $0x70] sm:$0xff]
      %v297 = vld [vmem:[%s274 + $0x78] sm:$0xff]
      %v298 = vmax.f32 %v282, 0.0
      %v299 = vmax.f32 %v283, 0.0
      %v300 = vmax.f32 %v284, 0.0
      %v301 = vmax.f32 %v285, 0.0
      %v302 = vmax.f32 %v286, 0.0
      %v303 = vmax.f32 %v287, 0.0
      %v304 = vmax.f32 %v288, 0.0
      %v305 = vmax.f32 %v289, 0.0
      %v306 = vmax.f32 %v290, 0.0
      %v307 = vmax.f32 %v291, 0.0
      %v308 = vmax.f32 %v292, 0.0
      %v309 = vmax.f32 %v293, 0.0
      %v310 = vmax.f32 %v294, 0.0
      %v311 = vmax.f32 %v295, 0.0
      %v312 = vmax.f32 %v296, 0.0
      %v313 = vmax.f32 %v297, 0.0
      %v314 = vld [vmem:[%s1] sm:$0xff]
      %v315 = vld [vmem:[%s2] sm:$0x1]
      %v317 = vlaneseq
      %v318 = vshrl.u32 %v317, 7
      %v319 = vsub.s32 0, %v318
      %v320 = vrot.slane %v315, %v319
      %vm322 = vcmask 64512
      %v324 = vsel %vm322, %v298, 0
      %v327 = vsel %vm322, %v299, 0
      %v330 = vsel %vm322, %v300, 0
      %v333 = vsel %vm322, %v301, 0
      %v336 = vsel %vm322, %v302, 0
      %v339 = vsel %vm322, %v303, 0
      %v342 = vsel %vm322, %v304, 0
      %v345 = vsel %vm322, %v305, 0
      %v348 = vsel %vm322, %v306, 0
      %v351 = vsel %vm322, %v307, 0
      %v354 = vsel %vm322, %v308, 0
      %v357 = vsel %vm322, %v309, 0
      %v360 = vsel %vm322, %v310, 0
      %v363 = vsel %vm322, %v311, 0
      %v366 = vsel %vm322, %v312, 0
      %v369 = vsel %vm322, %v313, 0
      %371 = vmatprep.subr.mxu0 0.0
      %372 = vmatpush1.msra.mxu0 %v314
      %373 = vmatprep.subr.mxu0 0.0
      %374 = vmatpush1.msra.mxu0 0.0
      %375 = vmatprep.subr.mxu0 0.0
      %376 = vmatpush1.msra.mxu0 0.0
      %377 = vmatprep.subr.mxu0 0.0
      %378 = vmatpush1.msra.mxu0 0.0
      %379 = vmatprep.subr.mxu0 0.0
      %380 = vmatpush1.msra.mxu0 0.0
      %381 = vmatprep.subr.mxu0 0.0
      %382 = vmatpush1.msra.mxu0 0.0
      %383 = vmatprep.subr.mxu0 0.0
      %384 = vmatpush1.msra.mxu0 0.0
      %385 = vmatprep.subr.mxu0 0.0
      %386 = vmatpush1.msra.mxu0 0.0
      %387 = vmatprep.subr.mxu0 0.0
      %388 = vmatpush1.msra.mxu0 0.0
      %389 = vmatprep.subr.mxu0 0.0
      %390 = vmatpush1.msra.mxu0 0.0
      %391 = vmatprep.subr.mxu0 0.0
      %392 = vmatpush1.msra.mxu0 0.0
      %393 = vmatprep.subr.mxu0 0.0
      %394 = vmatpush1.msra.mxu0 0.0
      %395 = vmatprep.subr.mxu0 0.0
      %396 = vmatpush1.msra.mxu0 0.0
      %397 = vmatprep.subr.mxu0 0.0
      %398 = vmatpush1.msra.mxu0 0.0
      %399 = vmatprep.subr.mxu0 0.0
      %400 = vmatpush1.msra.mxu0 0.0
      %401 = vmatprep.subr.mxu0 0.0
      %402 = vmatpush1.msra.mxu0 0.0
      %403 = vmatprep.subr.mxu0 0.0
      %404 = vmatpush1.msra.mxu0 0.0
      %405 = vmatprep.subr.mxu0 0.0
      %406 = vmatpush1.msra.mxu0 0.0
      %407 = vmatprep.subr.mxu0 0.0
      %408 = vmatpush1.msra.mxu0 0.0
      %409 = vmatprep.subr.mxu0 0.0
      %410 = vmatpush1.msra.mxu0 0.0
      %411 = vmatprep.subr.mxu0 0.0
      %412 = vmatpush1.msra.mxu0 0.0
      %413 = vmatprep.subr.mxu0 0.0
      %414 = vmatpush1.msra.mxu0 0.0
      %415 = vmatprep.subr.mxu0 0.0
      %416 = vmatpush1.msra.mxu0 0.0
      %417 = vmatprep.subr.mxu0 0.0
      %418 = vmatpush1.msra.mxu0 0.0
      %419 = vmatprep.subr.mxu0 0.0
      %420 = vmatpush1.msra.mxu0 0.0
      %421 = vmatprep.subr.mxu0 0.0
      %422 = vmatpush1.msra.mxu0 0.0
      %423 = vmatprep.subr.mxu0 0.0
      %424 = vmatpush1.msra.mxu0 0.0
      %425 = vmatprep.subr.mxu0 0.0
      %426 = vmatpush1.msra.mxu0 0.0
      %427 = vmatprep.subr.mxu0 0.0
      %428 = vmatpush1.msra.mxu0 0.0
      %429 = vmatprep.subr.mxu0 0.0
      %430 = vmatpush1.msra.mxu0 0.0
      %431 = vmatprep.subr.mxu0 0.0
      %432 = vmatpush1.msra.mxu0 0.0
      %433 = vmatprep.subr.mxu0 0.0
      %434 = vmatpush1.msra.mxu0 0.0
      %435 = vmatprep.mubr.f32.mxu0 0.0
      %436 = vmatmul.mubr.f32.gmra.mrb[0].mxu0 %v324
      %v437 = vpop.f32.mrb[0].mxu0
      %v438 = vadd.f32 %v320, %v437
      %v439 = vpop.f32.mrb[0].mxu0
      %440 = vmatprep.mubr.f32.mxu0 0.0
      %441 = vmatmul.mubr.f32.gmra.mrb[0].mxu0 %v327
      %v442 = vpop.f32.mrb[0].mxu0
      %v443 = vadd.f32 %v320, %v442
      %v444 = vpop.f32.mrb[0].mxu0
      %445 = vmatprep.mubr.f32.mxu0 0.0
      %446 = vmatmul.mubr.f32.gmra.mrb[0].mxu0 %v330
      %v447 = vpop.f32.mrb[0].mxu0
      %v448 = vadd.f32 %v320, %v447
      %v449 = vpop.f32.mrb[0].mxu0
      %450 = vmatprep.mubr.f32.mxu0 0.0
      %451 = vmatmul.mubr.f32.gmra.mrb[0].mxu0 %v333
      %v452 = vpop.f32.mrb[0].mxu0
      %v453 = vadd.f32 %v320, %v452
      %v454 = vpop.f32.mrb[0].mxu0
      %455 = vmatprep.mubr.f32.mxu0 0.0
      %456 = vmatmul.mubr.f32.gmra.mrb[0].mxu0 %v336
      %v457 = vpop.f32.mrb[0].mxu0
      %v458 = vadd.f32 %v320, %v457
      %v459 = vpop.f32.mrb[0].mxu0
      %460 = vmatprep.mubr.f32.mxu0 0.0
      %461 = vmatmul.mubr.f32.gmra.mrb[0].mxu0 %v339
      %v462 = vpop.f32.mrb[0].mxu0
      %v463 = vadd.f32 %v320, %v462
      %v464 = vpop.f32.mrb[0].mxu0
      %465 = vmatprep.mubr.f32.mxu0 0.0
      %466 = vmatmul.mubr.f32.gmra.mrb[0].mxu0 %v342
      %v467 = vpop.f32.mrb[0].mxu0
      %v468 = vadd.f32 %v320, %v467
      %v469 = vpop.f32.mrb[0].mxu0
      %470 = vmatprep.mubr.f32.mxu0 0.0
      %471 = vmatmul.mubr.f32.gmra.mrb[0].mxu0 %v345
      %v472 = vpop.f32.mrb[0].mxu0
      %v473 = vadd.f32 %v320, %v472
      %v474 = vpop.f32.mrb[0].mxu0
      %475 = vmatprep.mubr.f32.mxu0 0.0
      %476 = vmatmul.mubr.f32.gmra.mrb[0].mxu0 %v348
      %v477 = vpop.f32.mrb[0].mxu0
      %v478 = vadd.f32 %v320, %v477
      %v479 = vpop.f32.mrb[0].mxu0
      %480 = vmatprep.mubr.f32.mxu0 0.0
      %481 = vmatmul.mubr.f32.gmra.mrb[0].mxu0 %v351
      %v482 = vpop.f32.mrb[0].mxu0
      %v483 = vadd.f32 %v320, %v482
      %v484 = vpop.f32.mrb[0].mxu0
      %485 = vmatprep.mubr.f32.mxu0 0.0
      %486 = vmatmul.mubr.f32.gmra.mrb[0].mxu0 %v354
      %v487 = vpop.f32.mrb[0].mxu0
      %v488 = vadd.f32 %v320, %v487
      %v489 = vpop.f32.mrb[0].mxu0
      %490 = vmatprep.mubr.f32.mxu0 0.0
      %491 = vmatmul.mubr.f32.gmra.mrb[0].mxu0 %v357
      %v492 = vpop.f32.mrb[0].mxu0
      %v493 = vadd.f32 %v320, %v492
      %v494 = vpop.f32.mrb[0].mxu0
      %495 = vmatprep.mubr.f32.mxu0 0.0
      %496 = vmatmul.mubr.f32.gmra.mrb[0].mxu0 %v360
      %v497 = vpop.f32.mrb[0].mxu0
      %v498 = vadd.f32 %v320, %v497
      %v499 = vpop.f32.mrb[0].mxu0
      %500 = vmatprep.mubr.f32.mxu0 0.0
      %501 = vmatmul.mubr.f32.gmra.mrb[0].mxu0 %v363
      %v502 = vpop.f32.mrb[0].mxu0
      %v503 = vadd.f32 %v320, %v502
      %v504 = vpop.f32.mrb[0].mxu0
      %505 = vmatprep.mubr.f32.mxu0 0.0
      %506 = vmatmul.mubr.f32.gmra.mrb[0].mxu0 %v366
      %v507 = vpop.f32.mrb[0].mxu0
      %v508 = vadd.f32 %v320, %v507
      %v509 = vpop.f32.mrb[0].mxu0
      %510 = vmatprep.mubr.f32.mxu0 0.0
      %511 = vmatmul.mubr.f32.gmra.mrb[0].mxu0 %v369
      %v512 = vpop.f32.mrb[0].mxu0
      %v513 = vadd.f32 %v320, %v512
      %v514 = vpop.f32.mrb[0].mxu0
      %515 = vdwg.mxu0
      %v516 = vmax.f32 %v438, 0.0
      %v517 = vmax.f32 %v443, 0.0
      %v518 = vmax.f32 %v448, 0.0
      %v519 = vmax.f32 %v453, 0.0
      %v520 = vmax.f32 %v458, 0.0
      %v521 = vmax.f32 %v463, 0.0
      %v522 = vmax.f32 %v468, 0.0
      %v523 = vmax.f32 %v473, 0.0
      %v524 = vmax.f32 %v478, 0.0
      %v525 = vmax.f32 %v483, 0.0
      %v526 = vmax.f32 %v488, 0.0
      %v527 = vmax.f32 %v493, 0.0
      %v528 = vmax.f32 %v498, 0.0
      %v529 = vmax.f32 %v503, 0.0
      %v530 = vmax.f32 %v508, 0.0
      %v531 = vmax.f32 %v513, 0.0
      %v532 = vld [vmem:[%s3] sm:$0xff]
      %v533 = vld [vmem:[%s3 + $0x8] sm:$0xff]
      %v534 = vld [vmem:[%s3 + $0x10] sm:$0xff]
      %v535 = vld [vmem:[%s3 + $0x18] sm:$0xff]
      %v536 = vld [vmem:[%s3 + $0x20] sm:$0xff]
      %v537 = vld [vmem:[%s3 + $0x28] sm:$0xff]
      %v538 = vld [vmem:[%s3 + $0x30] sm:$0xff]
      %v539 = vld [vmem:[%s3 + $0x38] sm:$0xff]
      %v540 = vld [vmem:[%s3 + $0x40] sm:$0xff]
      %v541 = vld [vmem:[%s3 + $0x48] sm:$0xff]
      %v542 = vld [vmem:[%s3 + $0x50] sm:$0xff]
      %v543 = vld [vmem:[%s3 + $0x58] sm:$0xff]
      %v544 = vld [vmem:[%s3 + $0x60] sm:$0xff]
      %v545 = vld [vmem:[%s3 + $0x68] sm:$0xff]
      %v546 = vld [vmem:[%s3 + $0x70] sm:$0xff]
      %v547 = vld [vmem:[%s3 + $0x78] sm:$0xff]
      %v548 = vld [vmem:[%s4] sm:$0x1]
      %v550 = vlaneseq
      %v551 = vshrl.u32 %v550, 7
      %v552 = vsub.s32 0, %v551
      %v553 = vrot.slane %v548, %v552
      %555 = vmatprep.subr.mxu0 0.0
      %556 = vmatpush1.msra.mxu0 %v532
      %557 = vmatprep.subr.mxu0 0.0
      %558 = vmatpush1.msra.mxu0 %v533
      %559 = vmatprep.subr.mxu0 0.0
      %560 = vmatpush1.msra.mxu0 %v534
      %561 = vmatprep.subr.mxu0 0.0
      %562 = vmatpush1.msra.mxu0 %v535
      %563 = vmatprep.subr.mxu0 0.0
      %564 = vmatpush1.msra.mxu0 %v536
      %565 = vmatprep.subr.mxu0 0.0
      %566 = vmatpush1.msra.mxu0 %v537
      %567 = vmatprep.subr.mxu0 0.0
      %568 = vmatpush1.msra.mxu0 %v538
      %569 = vmatprep.subr.mxu0 0.0
      %570 = vmatpush1.msra.mxu0 %v539
      %571 = vmatprep.subr.mxu0 0.0
      %572 = vmatpush1.msra.mxu0 %v540
      %573 = vmatprep.subr.mxu0 0.0
      %574 = vmatpush1.msra.mxu0 %v541
      %575 = vmatprep.subr.mxu0 0.0
      %576 = vmatpush1.msra.mxu0 %v542
      %577 = vmatprep.subr.mxu0 0.0
      %578 = vmatpush1.msra.mxu0 %v543
      %579 = vmatprep.subr.mxu0 0.0
      %580 = vmatpush1.msra.mxu0 %v544
      %581 = vmatprep.subr.mxu0 0.0
      %582 = vmatpush1.msra.mxu0 %v545
      %583 = vmatprep.subr.mxu0 0.0
      %584 = vmatpush1.msra.mxu0 %v546
      %585 = vmatprep.subr.mxu0 0.0
      %586 = vmatpush1.msra.mxu0 %v547
      %587 = vmatprep.subr.mxu0 0.0
      %588 = vmatpush1.msra.mxu0 0.0
      %589 = vmatprep.subr.mxu0 0.0
      %590 = vmatpush1.msra.mxu0 0.0
      %591 = vmatprep.subr.mxu0 0.0
      %592 = vmatpush1.msra.mxu0 0.0
      %593 = vmatprep.subr.mxu0 0.0
      %594 = vmatpush1.msra.mxu0 0.0
      %595 = vmatprep.subr.mxu0 0.0
      %596 = vmatpush1.msra.mxu0 0.0
      %597 = vmatprep.subr.mxu0 0.0
      %598 = vmatpush1.msra.mxu0 0.0
      %599 = vmatprep.subr.mxu0 0.0
      %600 = vmatpush1.msra.mxu0 0.0
      %601 = vmatprep.subr.mxu0 0.0
      %602 = vmatpush1.msra.mxu0 0.0
      %603 = vmatprep.subr.mxu0 0.0
      %604 = vmatpush1.msra.mxu0 0.0
      %605 = vmatprep.subr.mxu0 0.0
      %606 = vmatpush1.msra.mxu0 0.0
      %607 = vmatprep.subr.mxu0 0.0
      %608 = vmatpush1.msra.mxu0 0.0
      %609 = vmatprep.subr.mxu0 0.0
      %610 = vmatpush1.msra.mxu0 0.0
      %611 = vmatprep.subr.mxu0 0.0
      %612 = vmatpush1.msra.mxu0 0.0
      %613 = vmatprep.subr.mxu0 0.0
      %614 = vmatpush1.msra.mxu0 0.0
      %615 = vmatprep.subr.mxu0 0.0
      %616 = vmatpush1.msra.mxu0 0.0
      %617 = vmatprep.subr.mxu0 0.0
      %618 = vmatpush1.msra.mxu0 0.0
      %619 = vmatprep.mubr.f32.mxu0 0.0
      %620 = vmatmul.mubr.f32.gmra.mrb[0].mxu0 %v516
      %v621 = vpop.f32.mrb[0].mxu0
      %v622 = vadd.f32 %v553, %v621
      %v623 = vpop.f32.mrb[0].mxu0
      %624 = vmatprep.mubr.f32.mxu0 0.0
      %625 = vmatmul.mubr.f32.gmra.mrb[0].mxu0 %v517
      %v626 = vpop.f32.mrb[0].mxu0
      %v627 = vadd.f32 %v553, %v626
      %v628 = vpop.f32.mrb[0].mxu0
      %629 = vmatprep.mubr.f32.mxu0 0.0
      %630 = vmatmul.mubr.f32.gmra.mrb[0].mxu0 %v518
      %v631 = vpop.f32.mrb[0].mxu0
      %v632 = vadd.f32 %v553, %v631
      %v633 = vpop.f32.mrb[0].mxu0
      %634 = vmatprep.mubr.f32.mxu0 0.0
      %635 = vmatmul.mubr.f32.gmra.mrb[0].mxu0 %v519
      %v636 = vpop.f32.mrb[0].mxu0
      %v637 = vadd.f32 %v553, %v636
      %v638 = vpop.f32.mrb[0].mxu0
      %639 = vmatprep.mubr.f32.mxu0 0.0
      %640 = vmatmul.mubr.f32.gmra.mrb[0].mxu0 %v520
      %v641 = vpop.f32.mrb[0].mxu0
      %v642 = vadd.f32 %v553, %v641
      %v643 = vpop.f32.mrb[0].mxu0
      %644 = vmatprep.mubr.f32.mxu0 0.0
      %645 = vmatmul.mubr.f32.gmra.mrb[0].mxu0 %v521
      %v646 = vpop.f32.mrb[0].mxu0
      %v647 = vadd.f32 %v553, %v646
      %v648 = vpop.f32.mrb[0].mxu0
      %649 = vmatprep.mubr.f32.mxu0 0.0
      %650 = vmatmul.mubr.f32.gmra.mrb[0].mxu0 %v522
      %v651 = vpop.f32.mrb[0].mxu0
      %v652 = vadd.f32 %v553, %v651
      %v653 = vpop.f32.mrb[0].mxu0
      %654 = vmatprep.mubr.f32.mxu0 0.0
      %655 = vmatmul.mubr.f32.gmra.mrb[0].mxu0 %v523
      %v656 = vpop.f32.mrb[0].mxu0
      %v657 = vadd.f32 %v553, %v656
      %v658 = vpop.f32.mrb[0].mxu0
      %659 = vmatprep.mubr.f32.mxu0 0.0
      %660 = vmatmul.mubr.f32.gmra.mrb[0].mxu0 %v524
      %v661 = vpop.f32.mrb[0].mxu0
      %v662 = vadd.f32 %v553, %v661
      %v663 = vpop.f32.mrb[0].mxu0
      %664 = vmatprep.mubr.f32.mxu0 0.0
      %665 = vmatmul.mubr.f32.gmra.mrb[0].mxu0 %v525
      %v666 = vpop.f32.mrb[0].mxu0
      %v667 = vadd.f32 %v553, %v666
      %v668 = vpop.f32.mrb[0].mxu0
      %669 = vmatprep.mubr.f32.mxu0 0.0
      %670 = vmatmul.mubr.f32.gmra.mrb[0].mxu0 %v526
      %v671 = vpop.f32.mrb[0].mxu0
      %v672 = vadd.f32 %v553, %v671
      %v673 = vpop.f32.mrb[0].mxu0
      %674 = vmatprep.mubr.f32.mxu0 0.0
      %675 = vmatmul.mubr.f32.gmra.mrb[0].mxu0 %v527
      %v676 = vpop.f32.mrb[0].mxu0
      %v677 = vadd.f32 %v553, %v676
      %v678 = vpop.f32.mrb[0].mxu0
      %679 = vmatprep.mubr.f32.mxu0 0.0
      %680 = vmatmul.mubr.f32.gmra.mrb[0].mxu0 %v528
      %v681 = vpop.f32.mrb[0].mxu0
      %v682 = vadd.f32 %v553, %v681
      %v683 = vpop.f32.mrb[0].mxu0
      %684 = vmatprep.mubr.f32.mxu0 0.0
      %685 = vmatmul.mubr.f32.gmra.mrb[0].mxu0 %v529
      %v686 = vpop.f32.mrb[0].mxu0
      %v687 = vadd.f32 %v553, %v686
      %v688 = vpop.f32.mrb[0].mxu0
      %689 = vmatprep.mubr.f32.mxu0 0.0
      %690 = vmatmul.mubr.f32.gmra.mrb[0].mxu0 %v530
      %v691 = vpop.f32.mrb[0].mxu0
      %v692 = vadd.f32 %v553, %v691
      %v693 = vpop.f32.mrb[0].mxu0
      %694 = vmatprep.mubr.f32.mxu0 0.0
      %695 = vmatmul.mubr.f32.gmra.mrb[0].mxu0 %v531
      %v696 = vpop.f32.mrb[0].mxu0
      %v697 = vadd.f32 %v553, %v696
      %v698 = vpop.f32.mrb[0].mxu0
      %699 = vdwg.mxu0
      %v700 = vmax.f32 %v622, 0.0
      %v701 = vmax.f32 %v627, 0.0
      %v702 = vmax.f32 %v632, 0.0
      %v703 = vmax.f32 %v637, 0.0
      %v704 = vmax.f32 %v642, 0.0
      %v705 = vmax.f32 %v647, 0.0
      %v706 = vmax.f32 %v652, 0.0
      %v707 = vmax.f32 %v657, 0.0
      %v708 = vmax.f32 %v662, 0.0
      %v709 = vmax.f32 %v667, 0.0
      %v710 = vmax.f32 %v672, 0.0
      %v711 = vmax.f32 %v677, 0.0
      %v712 = vmax.f32 %v682, 0.0
      %v713 = vmax.f32 %v687, 0.0
      %v714 = vmax.f32 %v692, 0.0
      %v715 = vmax.f32 %v697, 0.0
      %v716 = vld [vmem:[%s5] sm:$0xff]
      %v717 = vld [vmem:[%s5 + $0x8] sm:$0xff]
      %v718 = vld [vmem:[%s5 + $0x10] sm:$0xff]
      %v719 = vld [vmem:[%s5 + $0x18] sm:$0xff]
      %v720 = vld [vmem:[%s5 + $0x20] sm:$0xff]
      %v721 = vld [vmem:[%s5 + $0x28] sm:$0xff]
      %v722 = vld [vmem:[%s5 + $0x30] sm:$0xff]
      %v723 = vld [vmem:[%s5 + $0x38] sm:$0xff]
      %v724 = vld [vmem:[%s5 + $0x40] sm:$0xff]
      %v725 = vld [vmem:[%s5 + $0x48] sm:$0xff]
      %v726 = vld [vmem:[%s5 + $0x50] sm:$0xff]
      %v727 = vld [vmem:[%s5 + $0x58] sm:$0xff]
      %v728 = vld [vmem:[%s5 + $0x60] sm:$0xff]
      %v729 = vld [vmem:[%s5 + $0x68] sm:$0xff]
      %v730 = vld [vmem:[%s5 + $0x70] sm:$0xff]
      %v731 = vld [vmem:[%s5 + $0x78] sm:$0xff]
      %v732 = vld [vmem:[%s6] sm:$0x1]
      %v734 = vlaneseq
      %v735 = vshrl.u32 %v734, 7
      %v736 = vsub.s32 0, %v735
      %v737 = vrot.slane %v732, %v736
      %739 = vmatprep.subr.mxu0 0.0
      %740 = vmatpush1.msra.mxu0 %v716
      %741 = vmatprep.subr.mxu0 0.0
      %742 = vmatpush1.msra.mxu0 %v717
      %743 = vmatprep.subr.mxu0 0.0
      %744 = vmatpush1.msra.mxu0 %v718
      %745 = vmatprep.subr.mxu0 0.0
      %746 = vmatpush1.msra.mxu0 %v719
      %747 = vmatprep.subr.mxu0 0.0
      %748 = vmatpush1.msra.mxu0 %v720
      %749 = vmatprep.subr.mxu0 0.0
      %750 = vmatpush1.msra.mxu0 %v721
      %751 = vmatprep.subr.mxu0 0.0
      %752 = vmatpush1.msra.mxu0 %v722
      %753 = vmatprep.subr.mxu0 0.0
      %754 = vmatpush1.msra.mxu0 %v723
      %755 = vmatprep.subr.mxu0 0.0
      %756 = vmatpush1.msra.mxu0 %v724
      %757 = vmatprep.subr.mxu0 0.0
      %758 = vmatpush1.msra.mxu0 %v725
      %759 = vmatprep.subr.mxu0 0.0
      %760 = vmatpush1.msra.mxu0 %v726
      %761 = vmatprep.subr.mxu0 0.0
      %762 = vmatpush1.msra.mxu0 %v727
      %763 = vmatprep.subr.mxu0 0.0
      %764 = vmatpush1.msra.mxu0 %v728
      %765 = vmatprep.subr.mxu0 0.0
      %766 = vmatpush1.msra.mxu0 %v729
      %767 = vmatprep.subr.mxu0 0.0
      %768 = vmatpush1.msra.mxu0 %v730
      %769 = vmatprep.subr.mxu0 0.0
      %770 = vmatpush1.msra.mxu0 %v731
      %771 = vmatprep.subr.mxu0 0.0
      %772 = vmatpush1.msra.mxu0 0.0
      %773 = vmatprep.subr.mxu0 0.0
      %774 = vmatpush1.msra.mxu0 0.0
      %775 = vmatprep.subr.mxu0 0.0
      %776 = vmatpush1.msra.mxu0 0.0
      %777 = vmatprep.subr.mxu0 0.0
      %778 = vmatpush1.msra.mxu0 0.0
      %779 = vmatprep.subr.mxu0 0.0
      %780 = vmatpush1.msra.mxu0 0.0
      %781 = vmatprep.subr.mxu0 0.0
      %782 = vmatpush1.msra.mxu0 0.0
      %783 = vmatprep.subr.mxu0 0.0
      %784 = vmatpush1.msra.mxu0 0.0
      %785 = vmatprep.subr.mxu0 0.0
      %786 = vmatpush1.msra.mxu0 0.0
      %787 = vmatprep.subr.mxu0 0.0
      %788 = vmatpush1.msra.mxu0 0.0
      %789 = vmatprep.subr.mxu0 0.0
      %790 = vmatpush1.msra.mxu0 0.0
      %791 = vmatprep.subr.mxu0 0.0
      %792 = vmatpush1.msra.mxu0 0.0
      %793 = vmatprep.subr.mxu0 0.0
      %794 = vmatpush1.msra.mxu0 0.0
      %795 = vmatprep.subr.mxu0 0.0
      %796 = vmatpush1.msra.mxu0 0.0
      %797 = vmatprep.subr.mxu0 0.0
      %798 = vmatpush1.msra.mxu0 0.0
      %799 = vmatprep.subr.mxu0 0.0
      %800 = vmatpush1.msra.mxu0 0.0
      %801 = vmatprep.subr.mxu0 0.0
      %802 = vmatpush1.msra.mxu0 0.0
      %803 = vmatprep.mubr.f32.mxu0 0.0
      %804 = vmatmul.mubr.f32.gmra.mrb[0].mxu0 %v700
      %v805 = vpop.f32.mrb[0].mxu0
      %v806 = vadd.f32 %v737, %v805
      %v807 = vpop.f32.mrb[0].mxu0
      %808 = vmatprep.mubr.f32.mxu0 0.0
      %809 = vmatmul.mubr.f32.gmra.mrb[0].mxu0 %v701
      %v810 = vpop.f32.mrb[0].mxu0
      %v811 = vadd.f32 %v737, %v810
      %v812 = vpop.f32.mrb[0].mxu0
      %813 = vmatprep.mubr.f32.mxu0 0.0
      %814 = vmatmul.mubr.f32.gmra.mrb[0].mxu0 %v702
      %v815 = vpop.f32.mrb[0].mxu0
      %v816 = vadd.f32 %v737, %v815
      %v817 = vpop.f32.mrb[0].mxu0
      %818 = vmatprep.mubr.f32.mxu0 0.0
      %819 = vmatmul.mubr.f32.gmra.mrb[0].mxu0 %v703
      %v820 = vpop.f32.mrb[0].mxu0
      %v821 = vadd.f32 %v737, %v820
      %v822 = vpop.f32.mrb[0].mxu0
      %823 = vmatprep.mubr.f32.mxu0 0.0
      %824 = vmatmul.mubr.f32.gmra.mrb[0].mxu0 %v704
      %v825 = vpop.f32.mrb[0].mxu0
      %v826 = vadd.f32 %v737, %v825
      %v827 = vpop.f32.mrb[0].mxu0
      %828 = vmatprep.mubr.f32.mxu0 0.0
      %829 = vmatmul.mubr.f32.gmra.mrb[0].mxu0 %v705
      %v830 = vpop.f32.mrb[0].mxu0
      %v831 = vadd.f32 %v737, %v830
      %v832 = vpop.f32.mrb[0].mxu0
      %833 = vmatprep.mubr.f32.mxu0 0.0
      %834 = vmatmul.mubr.f32.gmra.mrb[0].mxu0 %v706
      %v835 = vpop.f32.mrb[0].mxu0
      %v836 = vadd.f32 %v737, %v835
      %v837 = vpop.f32.mrb[0].mxu0
      %838 = vmatprep.mubr.f32.mxu0 0.0
      %839 = vmatmul.mubr.f32.gmra.mrb[0].mxu0 %v707
      %v840 = vpop.f32.mrb[0].mxu0
      %v841 = vadd.f32 %v737, %v840
      %v842 = vpop.f32.mrb[0].mxu0
      %843 = vmatprep.mubr.f32.mxu0 0.0
      %844 = vmatmul.mubr.f32.gmra.mrb[0].mxu0 %v708
      %v845 = vpop.f32.mrb[0].mxu0
      %v846 = vadd.f32 %v737, %v845
      %v847 = vpop.f32.mrb[0].mxu0
      %848 = vmatprep.mubr.f32.mxu0 0.0
      %849 = vmatmul.mubr.f32.gmra.mrb[0].mxu0 %v709
      %v850 = vpop.f32.mrb[0].mxu0
      %v851 = vadd.f32 %v737, %v850
      %v852 = vpop.f32.mrb[0].mxu0
      %853 = vmatprep.mubr.f32.mxu0 0.0
      %854 = vmatmul.mubr.f32.gmra.mrb[0].mxu0 %v710
      %v855 = vpop.f32.mrb[0].mxu0
      %v856 = vadd.f32 %v737, %v855
      %v857 = vpop.f32.mrb[0].mxu0
      %858 = vmatprep.mubr.f32.mxu0 0.0
      %859 = vmatmul.mubr.f32.gmra.mrb[0].mxu0 %v711
      %v860 = vpop.f32.mrb[0].mxu0
      %v861 = vadd.f32 %v737, %v860
      %v862 = vpop.f32.mrb[0].mxu0
      %863 = vmatprep.mubr.f32.mxu0 0.0
      %864 = vmatmul.mubr.f32.gmra.mrb[0].mxu0 %v712
      %v865 = vpop.f32.mrb[0].mxu0
      %v866 = vadd.f32 %v737, %v865
      %v867 = vpop.f32.mrb[0].mxu0
      %868 = vmatprep.mubr.f32.mxu0 0.0
      %869 = vmatmul.mubr.f32.gmra.mrb[0].mxu0 %v713
      %v870 = vpop.f32.mrb[0].mxu0
      %v871 = vadd.f32 %v737, %v870
      %v872 = vpop.f32.mrb[0].mxu0
      %873 = vmatprep.mubr.f32.mxu0 0.0
      %874 = vmatmul.mubr.f32.gmra.mrb[0].mxu0 %v714
      %v875 = vpop.f32.mrb[0].mxu0
      %v876 = vadd.f32 %v737, %v875
      %v877 = vpop.f32.mrb[0].mxu0
      %878 = vmatprep.mubr.f32.mxu0 0.0
      %879 = vmatmul.mubr.f32.gmra.mrb[0].mxu0 %v715
      %v880 = vpop.f32.mrb[0].mxu0
      %v881 = vadd.f32 %v737, %v880
      %v882 = vpop.f32.mrb[0].mxu0
      %883 = vdwg.mxu0
      %v884 = vadd.f32 %v806, %v282
      %v885 = vadd.f32 %v811, %v283
      %v886 = vadd.f32 %v816, %v284
      %v887 = vadd.f32 %v821, %v285
      %v888 = vadd.f32 %v826, %v286
      %v889 = vadd.f32 %v831, %v287
      %v890 = vadd.f32 %v836, %v288
      %v891 = vadd.f32 %v841, %v289
      %v892 = vadd.f32 %v846, %v290
      %v893 = vadd.f32 %v851, %v291
      %v894 = vadd.f32 %v856, %v292
      %v895 = vadd.f32 %v861, %v293
      %v896 = vadd.f32 %v866, %v294
      %v897 = vadd.f32 %v871, %v295
      %v898 = vadd.f32 %v876, %v296
      %v899 = vadd.f32 %v881, %v297
      %900 = vst.msk [vmem:[%s280] sm:$0xff] %vm322, %v884
      %901 = vst.msk [vmem:[%s280 + $0x8] sm:$0xff] %vm322, %v885
      %902 = vst.msk [vmem:[%s280 + $0x10] sm:$0xff] %vm322, %v886
      %903 = vst.msk [vmem:[%s280 + $0x18] sm:$0xff] %vm322, %v887
      %904 = vst.msk [vmem:[%s280 + $0x20] sm:$0xff] %vm322, %v888
      %905 = vst.msk [vmem:[%s280 + $0x28] sm:$0xff] %vm322, %v889
      %906 = vst.msk [vmem:[%s280 + $0x30] sm:$0xff] %vm322, %v890
      %907 = vst.msk [vmem:[%s280 + $0x38] sm:$0xff] %vm322, %v891
      %908 = vst.msk [vmem:[%s280 + $0x40] sm:$0xff] %vm322, %v892
      %909 = vst.msk [vmem:[%s280 + $0x48] sm:$0xff] %vm322, %v893
      %910 = vst.msk [vmem:[%s280 + $0x50] sm:$0xff] %vm322, %v894
      %911 = vst.msk [vmem:[%s280 + $0x58] sm:$0xff] %vm322, %v895
      %912 = vst.msk [vmem:[%s280 + $0x60] sm:$0xff] %vm322, %v896
      %913 = vst.msk [vmem:[%s280 + $0x68] sm:$0xff] %vm322, %v897
      %914 = vst.msk [vmem:[%s280 + $0x70] sm:$0xff] %vm322, %v898
      %915 = vst.msk [vmem:[%s280 + $0x78] sm:$0xff] %vm322, %v899
      %s916 = smul.u32 16, %s18
      %p917 = scmp.lt.s32.totalorder %s916, 31
      %s918 = scalar_select %p917, %s916, 31
      %s919 = smul.addr %s918, 8
      %s920 = scalar_lea.vmem %s7, %s919
      // Predicated region
      $region49: #{tpu_custom_call.1} parent=47 // pred_check
        %p921 = pneg %p188
      $region50: #{tpu_custom_call.1} parent=47 // pred_check_branch
        %923 = sbr.rel (%p921) target = $region52
      $region51: #{tpu_custom_call.1} parent=47 // pred_region
        %s924 = smul.u32 16, %s18
      $region52: #{tpu_custom_call.1} parent=47 // pred_fallthru
        _
    $region48: #{tpu_custom_call.1} parent=5 // pred_fallthru
      _
    %p925 = scmp.le.s32.totalorder 2, %s13
    // Predicated region
    $region53: #{tpu_custom_call.1} parent=5 // pred_check
      %p926 = pneg %p925
    $region54: #{tpu_custom_call.1} parent=5 // pred_check_branch
      %928 = sbr.rel (%p926) target = $region56
    $region55: #{tpu_custom_call.1} parent=5 // pred_region
      %s929 = ssub.s32 %s13, 2
      // Predicated region
      $region57: #{tpu_custom_call.1} parent=55 // pred_check
        %p930 = pneg %p194
      $region58: #{tpu_custom_call.1} parent=55 // pred_check_branch
        %932 = sbr.rel (%p930) target = $region60
      $region59: #{tpu_custom_call.1} parent=55 // pred_region
        %s933 = smul.u32 16, %s19
        %p934 = scmp.lt.s32.totalorder %s933, 31
        %s935 = scalar_select %p934, %s933, 31
        %s936 = smul.addr %s935, 8
        %s937 = scalar_lea.vmem %s7, %s936
      $region60: #{tpu_custom_call.1} parent=55 // pred_fallthru
        _
    $region56: #{tpu_custom_call.1} parent=5 // pred_fallthru
      _
  $region6: #{tpu_custom_call.1} parent=0 // loop_footer
    %s17 = sadd.s32 1, %s13
  $region7: #{tpu_custom_call.1} parent=0 // loop_footer_branch
    %12 = sbr.rel target = $region3
  $region8: #{tpu_custom_call.1} parent=0 // loop_exit
    _

// kernel: tpu_custom_call.1
$region0: #{tpu_custom_call.1}
  #allocation0 [shape = 'u32[]', space=smem, size = 0x4, offset = 0x4, fixed_abs, tag = 'smem constant byte address 0x4 - core index']
  #allocation1 [shape = 'u32[144,128]{1,0:T(1,128)}', space=vmem, size = 0x12000, scoped, tag = 'internal scratch']
  %s0 = inlined_call_operand.vmem [shape: f32[256,8], index: 0, kind: input, shape index: {}]
  %s1 = inlined_call_operand.vmem [shape: f32[8,128], index: 1, kind: input, shape index: {}]
  %s2 = inlined_call_operand.vmem [shape: f32[1,128], index: 2, kind: input, shape index: {}]
  %s3 = inlined_call_operand.vmem [shape: f32[128,128], index: 3, kind: input, shape index: {}]
  %s4 = inlined_call_operand.vmem [shape: f32[1,128], index: 4, kind: input, shape index: {}]
  %s5 = inlined_call_operand.vmem [shape: f32[128,8], index: 5, kind: input, shape index: {}]
  %s6 = inlined_call_operand.vmem [shape: f32[1,8], index: 6, kind: input, shape index: {}]
  %s7 = inlined_call_operand.vmem [shape: f32[256,8], index: 7, kind: output, shape index: {}]
  %s8 = sld [smem:[#allocation0]]
  $region61: #{tpu_custom_call.1} parent=0
    _
  %s10 = ssub.s32 1, %s8
  %s11 = scalar_select 0, %s10, %s8
  loop: start=0, step=1, limit=4
  $region2: #{tpu_custom_call.1} parent=0 // loop_pre_header
    _
  $region3: #{tpu_custom_call.1} parent=0 // loop_header
    %s13 = sphi 0, %s17
    %p14 = scmp.ge.s32.totalorder %s13, 4
    %s23 = sphi 0, %s25
    %s26 = sphi 0, %s23
    %s27 = sphi 0, %s26
    %s43 = sphi 0, %s27
    %s47 = sphi 0, %s47
    %s49 = sphi 0, %s47
    %s50 = sphi 0, %s49
    %s64 = sphi 0, %s50
    %s68 = sphi 0, %s68
    %s70 = sphi 0, %s68
    %s71 = sphi 0, %s70
    %s85 = sphi 0, %s71
    %s89 = sphi 0, %s89
    %s91 = sphi 0, %s89
    %s92 = sphi 0, %s91
    %s106 = sphi 0, %s92
    %s110 = sphi 0, %s110
    %s112 = sphi 0, %s110
    %s113 = sphi 0, %s112
    %s127 = sphi 0, %s113
    %s131 = sphi 0, %s131
    %s133 = sphi 0, %s131
    %s134 = sphi 0, %s133
    %s148 = sphi 0, %s134
    %s152 = sphi 0, %s152
    %s154 = sphi 0, %s152
    %s155 = sphi 0, %s154
    %s169 = sphi 0, %s155
    %s175 = sphi 0, %s177
    %s178 = sphi 0, %s175
    %s179 = sphi 0, %s178
    %s195 = sphi 0, %s179
  $region4: #{tpu_custom_call.1} parent=0 // loop_header_branch
    %16 = sbr.rel (%p14) target = $region8
  $region5: #{tpu_custom_call.1} parent=0 // loop_body
    %s18 = ssub.s32 %s13, 1
    %s19 = ssub.s32 %s13, 2
    %s20 = sadd.s32 %s13, 1
    %s21 = ssub.s32 %s13, %s20
    %p22 = scmp.eq.s32.totalorder %s21, 0
    %s24 = sadd.s32 %s23, 1
    %s25 = scalar_select %p22, %s23, %s24
    %p28 = pneg %p22
    %p29 = scmp.eq.s32.totalorder %s13, 1
    %p30 = por %p28, %p29
    %p31 = scmp.ne.s32.totalorder %s23, %s26
    %p32 = scmp.eq.s32.totalorder %s13, 0
    %p33 = por %p31, %p32
    %p34 = scmp.ne.s32.totalorder %s23, %s26
    %p35 = scmp.eq.s32.totalorder %s18, 1
    %p36 = por %p34, %p35
    %p37 = scmp.ne.s32.totalorder %s26, %s27
    %p38 = scmp.eq.s32.totalorder %s18, 0
    %p39 = por %p37, %p38
    %p40 = scmp.ne.s32.totalorder %s26, %s27
    %p41 = scmp.eq.s32.totalorder %s19, 1
    %p42 = por %p40, %p41
    %p44 = scmp.ne.s32.totalorder %s27, %s43
    %p45 = scmp.eq.s32.totalorder %s19, 0
    %p46 = por %p44, %p45
    %s48 = sadd.s32 %s47, 1
    %p51 = scmp.eq.s32.totalorder %s13, 1
    %p52 = scmp.ne.s32.totalorder %s47, %s49
    %p53 = scmp.eq.s32.totalorder %s13, 0
    %p54 = por %p52, %p53
    %p55 = scmp.ne.s32.totalorder %s47, %s49
    %p56 = scmp.eq.s32.totalorder %s18, 1
    %p57 = por %p55, %p56
    %p58 = scmp.ne.s32.totalorder %s49, %s50
    %p59 = scmp.eq.s32.totalorder %s18, 0
    %p60 = por %p58, %p59
    %p61 = scmp.ne.s32.totalorder %s49, %s50
    %p62 = scmp.eq.s32.totalorder %s19, 1
    %p63 = por %p61, %p62
    %p65 = scmp.ne.s32.totalorder %s50, %s64
    %p66 = scmp.eq.s32.totalorder %s19, 0
    %p67 = por %p65, %p66
    %s69 = sadd.s32 %s68, 1
    %p72 = scmp.eq.s32.totalorder %s13, 1
    %p73 = scmp.ne.s32.totalorder %s68, %s70
    %p74 = scmp.eq.s32.totalorder %s13, 0
    %p75 = por %p73, %p74
    %p76 = scmp.ne.s32.totalorder %s68, %s70
    %p77 = scmp.eq.s32.totalorder %s18, 1
    %p78 = por %p76, %p77
    %p79 = scmp.ne.s32.totalorder %s70, %s71
    %p80 = scmp.eq.s32.totalorder %s18, 0
    %p81 = por %p79, %p80
    %p82 = scmp.ne.s32.totalorder %s70, %s71
    %p83 = scmp.eq.s32.totalorder %s19, 1
    %p84 = por %p82, %p83
    %p86 = scmp.ne.s32.totalorder %s71, %s85
    %p87 = scmp.eq.s32.totalorder %s19, 0
    %p88 = por %p86, %p87
    %s90 = sadd.s32 %s89, 1
    %p93 = scmp.eq.s32.totalorder %s13, 1
    %p94 = scmp.ne.s32.totalorder %s89, %s91
    %p95 = scmp.eq.s32.totalorder %s13, 0
    %p96 = por %p94, %p95
    %p97 = scmp.ne.s32.totalorder %s89, %s91
    %p98 = scmp.eq.s32.totalorder %s18, 1
    %p99 = por %p97, %p98
    %p100 = scmp.ne.s32.totalorder %s91, %s92
    %p101 = scmp.eq.s32.totalorder %s18, 0
    %p102 = por %p100, %p101
    %p103 = scmp.ne.s32.totalorder %s91, %s92
    %p104 = scmp.eq.s32.totalorder %s19, 1
    %p105 = por %p103, %p104
    %p107 = scmp.ne.s32.totalorder %s92, %s106
    %p108 = scmp.eq.s32.totalorder %s19, 0
    %p109 = por %p107, %p108
    %s111 = sadd.s32 %s110, 1
    %p114 = scmp.eq.s32.totalorder %s13, 1
    %p115 = scmp.ne.s32.totalorder %s110, %s112
    %p116 = scmp.eq.s32.totalorder %s13, 0
    %p117 = por %p115, %p116
    %p118 = scmp.ne.s32.totalorder %s110, %s112
    %p119 = scmp.eq.s32.totalorder %s18, 1
    %p120 = por %p118, %p119
    %p121 = scmp.ne.s32.totalorder %s112, %s113
    %p122 = scmp.eq.s32.totalorder %s18, 0
    %p123 = por %p121, %p122
    %p124 = scmp.ne.s32.totalorder %s112, %s113
    %p125 = scmp.eq.s32.totalorder %s19, 1
    %p126 = por %p124, %p125
    %p128 = scmp.ne.s32.totalorder %s113, %s127
    %p129 = scmp.eq.s32.totalorder %s19, 0
    %p130 = por %p128, %p129
    %s132 = sadd.s32 %s131, 1
    %p135 = scmp.eq.s32.totalorder %s13, 1
    %p136 = scmp.ne.s32.totalorder %s131, %s133
    %p137 = scmp.eq.s32.totalorder %s13, 0
    %p138 = por %p136, %p137
    %p139 = scmp.ne.s32.totalorder %s131, %s133
    %p140 = scmp.eq.s32.totalorder %s18, 1
    %p141 = por %p139, %p140
    %p142 = scmp.ne.s32.totalorder %s133, %s134
    %p143 = scmp.eq.s32.totalorder %s18, 0
    %p144 = por %p142, %p143
    %p145 = scmp.ne.s32.totalorder %s133, %s134
    %p146 = scmp.eq.s32.totalorder %s19, 1
    %p147 = por %p145, %p146
    %p149 = scmp.ne.s32.totalorder %s134, %s148
    %p150 = scmp.eq.s32.totalorder %s19, 0
    %p151 = por %p149, %p150
    %s153 = sadd.s32 %s152, 1
    %p156 = scmp.eq.s32.totalorder %s13, 1
    %p157 = scmp.ne.s32.totalorder %s152, %s154
    %p158 = scmp.eq.s32.totalorder %s13, 0
    %p159 = por %p157, %p158
    %p160 = scmp.ne.s32.totalorder %s152, %s154
    %p161 = scmp.eq.s32.totalorder %s18, 1
    %p162 = por %p160, %p161
    %p163 = scmp.ne.s32.totalorder %s154, %s155
    %p164 = scmp.eq.s32.totalorder %s18, 0
    %p165 = por %p163, %p164
    %p166 = scmp.ne.s32.totalorder %s154, %s155
    %p167 = scmp.eq.s32.totalorder %s19, 1
    %p168 = por %p166, %p167
    %p170 = scmp.ne.s32.totalorder %s155, %s169
    %p171 = scmp.eq.s32.totalorder %s19, 0
    %p172 = por %p170, %p171
    %s173 = ssub.s32 %s13, %s20
    %p174 = scmp.eq.s32.totalorder %s173, 0
    %s176 = sadd.s32 %s175, 1
    %s177 = scalar_select %p174, %s175, %s176
    %p180 = pneg %p174
    %p181 = scmp.eq.s32.totalorder %s13, 1
    %p182 = por %p180, %p181
    %p183 = scmp.ne.s32.totalorder %s175, %s178
    %p184 = scmp.eq.s32.totalorder %s13, 0
    %p185 = por %p183, %p184
    %p186 = scmp.ne.s32.totalorder %s175, %s178
    %p187 = scmp.eq.s32.totalorder %s18, 1
    %p188 = por %p186, %p187
    %p189 = scmp.ne.s32.totalorder %s178, %s179
    %p190 = scmp.eq.s32.totalorder %s18, 0
    %p191 = por %p189, %p190
    %p192 = scmp.ne.s32.totalorder %s178, %s179
    %p193 = scmp.eq.s32.totalorder %s19, 1
    %p194 = por %p192, %p193
    %p196 = scmp.ne.s32.totalorder %s179, %s195
    %p197 = scmp.eq.s32.totalorder %s19, 0
    %p198 = por %p196, %p197
    %p199 = scmp.le.s32.totalorder 1, %s13
    %p200 = scmp.lt.s32.totalorder %s13, 3
    %p201 = pnand %p199, %p200
    %p202 = pneg %p201
    // Predicated region
    $region9: #{tpu_custom_call.1} parent=5 // pred_check
      _
    $region10: #{tpu_custom_call.1} parent=5 // pred_check_branch
      %204 = sbr.rel (%p201) target = $region12
    $region11: #{tpu_custom_call.1} parent=5 // pred_region
      %s205 = ssub.s32 %s13, 1
      // Predicated region
      $region13: #{tpu_custom_call.1} parent=11 // pred_check
        %p206 = pneg %p60
      $region14: #{tpu_custom_call.1} parent=11 // pred_check_branch
        %208 = sbr.rel (%p206) target = $region16
      $region15: #{tpu_custom_call.1} parent=11 // pred_region
        _
      $region16: #{tpu_custom_call.1} parent=11 // pred_fallthru
        _
      // Predicated region
      $region17: #{tpu_custom_call.1} parent=11 // pred_check
        %p209 = pneg %p81
      $region18: #{tpu_custom_call.1} parent=11 // pred_check_branch
        %211 = sbr.rel (%p209) target = $region20
      $region19: #{tpu_custom_call.1} parent=11 // pred_region
        _
      $region20: #{tpu_custom_call.1} parent=11 // pred_fallthru
        _
      // Predicated region
      $region21: #{tpu_custom_call.1} parent=11 // pred_check
        %p212 = pneg %p102
      $region22: #{tpu_custom_call.1} parent=11 // pred_check_branch
        %214 = sbr.rel (%p212) target = $region24
      $region23: #{tpu_custom_call.1} parent=11 // pred_region
        _
      $region24: #{tpu_custom_call.1} parent=11 // pred_fallthru
        _
      // Predicated region
      $region25: #{tpu_custom_call.1} parent=11 // pred_check
        %p215 = pneg %p123
      $region26: #{tpu_custom_call.1} parent=11 // pred_check_branch
        %217 = sbr.rel (%p215) target = $region28
      $region27: #{tpu_custom_call.1} parent=11 // pred_region
        _
      $region28: #{tpu_custom_call.1} parent=11 // pred_fallthru
        _
      // Predicated region
      $region29: #{tpu_custom_call.1} parent=11 // pred_check
        %p218 = pneg %p144
      $region30: #{tpu_custom_call.1} parent=11 // pred_check_branch
        %220 = sbr.rel (%p218) target = $region32
      $region31: #{tpu_custom_call.1} parent=11 // pred_region
        _
      $region32: #{tpu_custom_call.1} parent=11 // pred_fallthru
        _
      // Predicated region
      $region33: #{tpu_custom_call.1} parent=11 // pred_check
        %p221 = pneg %p165
      $region34: #{tpu_custom_call.1} parent=11 // pred_check_branch
        %223 = sbr.rel (%p221) target = $region36
      $region35: #{tpu_custom_call.1} parent=11 // pred_region
        _
      $region36: #{tpu_custom_call.1} parent=11 // pred_fallthru
        _
    $region12: #{tpu_custom_call.1} parent=5 // pred_fallthru
      _
    %p224 = scmp.lt.s32.totalorder %s13, 2
    // Predicated region
    $region37: #{tpu_custom_call.1} parent=5 // pred_check
      %p225 = pneg %p224
    $region38: #{tpu_custom_call.1} parent=5 // pred_check_branch
      %227 = sbr.rel (%p225) target = $region40
    $region39: #{tpu_custom_call.1} parent=5 // pred_region
      // Predicated region
      $region41: #{tpu_custom_call.1} parent=39 // pred_check
        %p228 = pneg %p33
      $region42: #{tpu_custom_call.1} parent=39 // pred_check_branch
        %230 = sbr.rel (%p228) target = $region44
      $region43: #{tpu_custom_call.1} parent=39 // pred_region
        %s231 = smul.u32 16, %s13
        %p232 = scmp.lt.s32.totalorder %s231, 31
        %s233 = scalar_select %p232, %s231, 31
        %s234 = smul.addr %s233, 8
        %s235 = scalar_lea.vmem %s0, %s234
        %s236 = smul.u32 16, %s13
      $region44: #{tpu_custom_call.1} parent=39 // pred_fallthru
        _
    $region40: #{tpu_custom_call.1} parent=5 // pred_fallthru
      _
    %p237 = scmp.le.s32.totalorder 1, %s13
    %p238 = scmp.lt.s32.totalorder %s13, 3
    %p239 = pnand %p237, %p238
    %p240 = pneg %p239
    // Predicated region
    $region45: #{tpu_custom_call.1} parent=5 // pred_check
      _
    $region46: #{tpu_custom_call.1} parent=5 // pred_check_branch
      %242 = sbr.rel (%p239) target = $region48
    $region47: #{tpu_custom_call.1} parent=5 // pred_region
      %s243 = ssub.s32 %s13, 1
      %s244 = smul.u32 16, %s18
      %p245 = scmp.lt.s32.totalorder %s244, 31
      %s246 = scalar_select %p245, %s244, 31
      %s247 = smul.addr %s246, 8
      %s248 = scalar_lea.vmem %s0, %s247
      %p249 = pneg %p39
      %p250 = pneg %p36
      %p251 = pneg %p60
      %p252 = pneg %p57
      %p253 = pneg %p81
      %p254 = pneg %p78
      %p255 = pneg %p102
      %p256 = pneg %p99
      %p257 = pneg %p123
      %p258 = pneg %p120
      %p259 = pneg %p144
      %p260 = pneg %p141
      %p261 = pneg %p165
      %p262 = pneg %p162
      %p263 = pneg %p191
      %p264 = pneg %p188
      %s265 = smul.u32 16, %s18
      %p266 = scmp.lt.s32.totalorder %s265, 31
      %s267 = scalar_select %p266, %s265, 31
      %s268 = smul.addr %s267, 8
      %s269 = scalar_lea.vmem %s7, %s268
      %s270 = smul.u32 16, %s18
      %p271 = scmp.lt.s32.totalorder %s270, 31
      %s272 = scalar_select %p271, %s270, 31
      %s273 = smul.addr %s272, 8
      %s274 = scalar_lea.vmem %s0, %s273
      %s275 = smul.u32 16, %s18
      %s276 = smul.u32 16, %s18
      %p277 = scmp.lt.s32.totalorder %s276, 31
      %s278 = scalar_select %p277, %s276, 31
      %s279 = smul.addr %s278, 8
      %s280 = scalar_lea.vmem %s7, %s279
      %s281 = smul.u32 16, %s18
      %v282 = vld [vmem:[%s274] sm:$0xff]
      %v283 = vld [vmem:[%s274 + $0x8] sm:$0xff]
      %v284 = vld [vmem:[%s274 + $0x10] sm:$0xff]
      %v285 = vld [vmem:[%s274 + $0x18] sm:$0xff]
      %v286 = vld [vmem:[%s274 + $0x20] sm:$0xff]
      %v287 = vld [vmem:[%s274 + $0x28] sm:$0xff]
      %v288 = vld [vmem:[%s274 + $0x30] sm:$0xff]
      %v289 = vld [vmem:[%s274 + $0x38] sm:$0xff]
      %v290 = vld [vmem:[%s274 + $0x40] sm:$0xff]
      %v291 = vld [vmem:[%s274 + $0x48] sm:$0xff]
      %v292 = vld [vmem:[%s274 + $0x50] sm:$0xff]
      %v293 = vld [vmem:[%s274 + $0x58] sm:$0xff]
      %v294 = vld [vmem:[%s274 + $0x60] sm:$0xff]
      %v295 = vld [vmem:[%s274 + $0x68] sm:$0xff]
      %v296 = vld [vmem:[%s274 + $0x70] sm:$0xff]
      %v297 = vld [vmem:[%s274 + $0x78] sm:$0xff]
      %v298 = vmax.f32 %v282, 0.0
      %v299 = vmax.f32 %v283, 0.0
      %v300 = vmax.f32 %v284, 0.0
      %v301 = vmax.f32 %v285, 0.0
      %v302 = vmax.f32 %v286, 0.0
      %v303 = vmax.f32 %v287, 0.0
      %v304 = vmax.f32 %v288, 0.0
      %v305 = vmax.f32 %v289, 0.0
      %v306 = vmax.f32 %v290, 0.0
      %v307 = vmax.f32 %v291, 0.0
      %v308 = vmax.f32 %v292, 0.0
      %v309 = vmax.f32 %v293, 0.0
      %v310 = vmax.f32 %v294, 0.0
      %v311 = vmax.f32 %v295, 0.0
      %v312 = vmax.f32 %v296, 0.0
      %v313 = vmax.f32 %v297, 0.0
      %v314 = vld [vmem:[%s1] sm:$0xff]
      %v315 = vld [vmem:[%s2] sm:$0x1]
      %v317 = vlaneseq
      %v318 = vshrl.u32 %v317, 7
      %v319 = vsub.s32 0, %v318
      %v320 = vrot.slane %v315, %v319
      %vm322 = vcmask 64512
      %v324 = vsel %vm322, %v298, 0
      %v327 = vsel %vm322, %v299, 0
      %v330 = vsel %vm322, %v300, 0
      %v333 = vsel %vm322, %v301, 0
      %v336 = vsel %vm322, %v302, 0
      %v339 = vsel %vm322, %v303, 0
      %v342 = vsel %vm322, %v304, 0
      %v345 = vsel %vm322, %v305, 0
      %v348 = vsel %vm322, %v306, 0
      %v351 = vsel %vm322, %v307, 0
      %v354 = vsel %vm322, %v308, 0
      %v357 = vsel %vm322, %v309, 0
      %v360 = vsel %vm322, %v310, 0
      %v363 = vsel %vm322, %v311, 0
      %v366 = vsel %vm322, %v312, 0
      %v369 = vsel %vm322, %v313, 0
      %371 = vmatprep.subr.mxu0 0.0
      %372 = vmatpush1.msra.mxu0 %v314
      %373 = vmatprep.subr.mxu0 0.0
      %374 = vmatpush1.msra.mxu0 0.0
      %375 = vmatprep.subr.mxu0 0.0
      %376 = vmatpush1.msra.mxu0 0.0
      %377 = vmatprep.subr.mxu0 0.0
      %378 = vmatpush1.msra.mxu0 0.0
      %379 = vmatprep.subr.mxu0 0.0
      %380 = vmatpush1.msra.mxu0 0.0
      %381 = vmatprep.subr.mxu0 0.0
      %382 = vmatpush1.msra.mxu0 0.0
      %383 = vmatprep.subr.mxu0 0.0
      %384 = vmatpush1.msra.mxu0 0.0
      %385 = vmatprep.subr.mxu0 0.0
      %386 = vmatpush1.msra.mxu0 0.0
      %387 = vmatprep.subr.mxu0 0.0
      %388 = vmatpush1.msra.mxu0 0.0
      %389 = vmatprep.subr.mxu0 0.0
      %390 = vmatpush1.msra.mxu0 0.0
      %391 = vmatprep.subr.mxu0 0.0
      %392 = vmatpush1.msra.mxu0 0.0
      %393 = vmatprep.subr.mxu0 0.0
      %394 = vmatpush1.msra.mxu0 0.0
      %395 = vmatprep.subr.mxu0 0.0
      %396 = vmatpush1.msra.mxu0 0.0
      %397 = vmatprep.subr.mxu0 0.0
      %398 = vmatpush1.msra.mxu0 0.0
      %399 = vmatprep.subr.mxu0 0.0
      %400 = vmatpush1.msra.mxu0 0.0
      %401 = vmatprep.subr.mxu0 0.0
      %402 = vmatpush1.msra.mxu0 0.0
      %403 = vmatprep.subr.mxu0 0.0
      %404 = vmatpush1.msra.mxu0 0.0
      %405 = vmatprep.subr.mxu0 0.0
      %406 = vmatpush1.msra.mxu0 0.0
      %407 = vmatprep.subr.mxu0 0.0
      %408 = vmatpush1.msra.mxu0 0.0
      %409 = vmatprep.subr.mxu0 0.0
      %410 = vmatpush1.msra.mxu0 0.0
      %411 = vmatprep.subr.mxu0 0.0
      %412 = vmatpush1.msra.mxu0 0.0
      %413 = vmatprep.subr.mxu0 0.0
      %414 = vmatpush1.msra.mxu0 0.0
      %415 = vmatprep.subr.mxu0 0.0
      %416 = vmatpush1.msra.mxu0 0.0
      %417 = vmatprep.subr.mxu0 0.0
      %418 = vmatpush1.msra.mxu0 0.0
      %419 = vmatprep.subr.mxu0 0.0
      %420 = vmatpush1.msra.mxu0 0.0
      %421 = vmatprep.subr.mxu0 0.0
      %422 = vmatpush1.msra.mxu0 0.0
      %423 = vmatprep.subr.mxu0 0.0
      %424 = vmatpush1.msra.mxu0 0.0
      %425 = vmatprep.subr.mxu0 0.0
      %426 = vmatpush1.msra.mxu0 0.0
      %427 = vmatprep.subr.mxu0 0.0
      %428 = vmatpush1.msra.mxu0 0.0
      %429 = vmatprep.subr.mxu0 0.0
      %430 = vmatpush1.msra.mxu0 0.0
      %431 = vmatprep.subr.mxu0 0.0
      %432 = vmatpush1.msra.mxu0 0.0
      %433 = vmatprep.subr.mxu0 0.0
      %434 = vmatpush1.msra.mxu0 0.0
      %435 = vmatprep.mubr.f32.mxu0 0.0
      %436 = vmatmul.mubr.f32.gmra.mrb[0].mxu0 %v324
      %v437 = vpop.f32.mrb[0].mxu0
      %v438 = vadd.f32 %v320, %v437
      %v439 = vpop.f32.mrb[0].mxu0
      %440 = vmatprep.mubr.f32.mxu0 0.0
      %441 = vmatmul.mubr.f32.gmra.mrb[0].mxu0 %v327
      %v442 = vpop.f32.mrb[0].mxu0
      %v443 = vadd.f32 %v320, %v442
      %v444 = vpop.f32.mrb[0].mxu0
      %445 = vmatprep.mubr.f32.mxu0 0.0
      %446 = vmatmul.mubr.f32.gmra.mrb[0].mxu0 %v330
      %v447 = vpop.f32.mrb[0].mxu0
      %v448 = vadd.f32 %v320, %v447
      %v449 = vpop.f32.mrb[0].mxu0
      %450 = vmatprep.mubr.f32.mxu0 0.0
      %451 = vmatmul.mubr.f32.gmra.mrb[0].mxu0 %v333
      %v452 = vpop.f32.mrb[0].mxu0
      %v453 = vadd.f32 %v320, %v452
      %v454 = vpop.f32.mrb[0].mxu0
      %455 = vmatprep.mubr.f32.mxu0 0.0
      %456 = vmatmul.mubr.f32.gmra.mrb[0].mxu0 %v336
      %v457 = vpop.f32.mrb[0].mxu0
      %v458 = vadd.f32 %v320, %v457
      %v459 = vpop.f32.mrb[0].mxu0
      %460 = vmatprep.mubr.f32.mxu0 0.0
      %461 = vmatmul.mubr.f32.gmra.mrb[0].mxu0 %v339
      %v462 = vpop.f32.mrb[0].mxu0
      %v463 = vadd.f32 %v320, %v462
      %v464 = vpop.f32.mrb[0].mxu0
      %465 = vmatprep.mubr.f32.mxu0 0.0
      %466 = vmatmul.mubr.f32.gmra.mrb[0].mxu0 %v342
      %v467 = vpop.f32.mrb[0].mxu0
      %v468 = vadd.f32 %v320, %v467
      %v469 = vpop.f32.mrb[0].mxu0
      %470 = vmatprep.mubr.f32.mxu0 0.0
      %471 = vmatmul.mubr.f32.gmra.mrb[0].mxu0 %v345
      %v472 = vpop.f32.mrb[0].mxu0
      %v473 = vadd.f32 %v320, %v472
      %v474 = vpop.f32.mrb[0].mxu0
      %475 = vmatprep.mubr.f32.mxu0 0.0
      %476 = vmatmul.mubr.f32.gmra.mrb[0].mxu0 %v348
      %v477 = vpop.f32.mrb[0].mxu0
      %v478 = vadd.f32 %v320, %v477
      %v479 = vpop.f32.mrb[0].mxu0
      %480 = vmatprep.mubr.f32.mxu0 0.0
      %481 = vmatmul.mubr.f32.gmra.mrb[0].mxu0 %v351
      %v482 = vpop.f32.mrb[0].mxu0
      %v483 = vadd.f32 %v320, %v482
      %v484 = vpop.f32.mrb[0].mxu0
      %485 = vmatprep.mubr.f32.mxu0 0.0
      %486 = vmatmul.mubr.f32.gmra.mrb[0].mxu0 %v354
      %v487 = vpop.f32.mrb[0].mxu0
      %v488 = vadd.f32 %v320, %v487
      %v489 = vpop.f32.mrb[0].mxu0
      %490 = vmatprep.mubr.f32.mxu0 0.0
      %491 = vmatmul.mubr.f32.gmra.mrb[0].mxu0 %v357
      %v492 = vpop.f32.mrb[0].mxu0
      %v493 = vadd.f32 %v320, %v492
      %v494 = vpop.f32.mrb[0].mxu0
      %495 = vmatprep.mubr.f32.mxu0 0.0
      %496 = vmatmul.mubr.f32.gmra.mrb[0].mxu0 %v360
      %v497 = vpop.f32.mrb[0].mxu0
      %v498 = vadd.f32 %v320, %v497
      %v499 = vpop.f32.mrb[0].mxu0
      %500 = vmatprep.mubr.f32.mxu0 0.0
      %501 = vmatmul.mubr.f32.gmra.mrb[0].mxu0 %v363
      %v502 = vpop.f32.mrb[0].mxu0
      %v503 = vadd.f32 %v320, %v502
      %v504 = vpop.f32.mrb[0].mxu0
      %505 = vmatprep.mubr.f32.mxu0 0.0
      %506 = vmatmul.mubr.f32.gmra.mrb[0].mxu0 %v366
      %v507 = vpop.f32.mrb[0].mxu0
      %v508 = vadd.f32 %v320, %v507
      %v509 = vpop.f32.mrb[0].mxu0
      %510 = vmatprep.mubr.f32.mxu0 0.0
      %511 = vmatmul.mubr.f32.gmra.mrb[0].mxu0 %v369
      %v512 = vpop.f32.mrb[0].mxu0
      %v513 = vadd.f32 %v320, %v512
      %v514 = vpop.f32.mrb[0].mxu0
      %515 = vdwg.mxu0
      %v516 = vmax.f32 %v438, 0.0
      %v517 = vmax.f32 %v443, 0.0
      %v518 = vmax.f32 %v448, 0.0
      %v519 = vmax.f32 %v453, 0.0
      %v520 = vmax.f32 %v458, 0.0
      %v521 = vmax.f32 %v463, 0.0
      %v522 = vmax.f32 %v468, 0.0
      %v523 = vmax.f32 %v473, 0.0
      %v524 = vmax.f32 %v478, 0.0
      %v525 = vmax.f32 %v483, 0.0
      %v526 = vmax.f32 %v488, 0.0
      %v527 = vmax.f32 %v493, 0.0
      %v528 = vmax.f32 %v498, 0.0
      %v529 = vmax.f32 %v503, 0.0
      %v530 = vmax.f32 %v508, 0.0
      %v531 = vmax.f32 %v513, 0.0
      %v532 = vld [vmem:[%s3] sm:$0xff]
      %v533 = vld [vmem:[%s3 + $0x8] sm:$0xff]
      %v534 = vld [vmem:[%s3 + $0x10] sm:$0xff]
      %v535 = vld [vmem:[%s3 + $0x18] sm:$0xff]
      %v536 = vld [vmem:[%s3 + $0x20] sm:$0xff]
      %v537 = vld [vmem:[%s3 + $0x28] sm:$0xff]
      %v538 = vld [vmem:[%s3 + $0x30] sm:$0xff]
      %v539 = vld [vmem:[%s3 + $0x38] sm:$0xff]
      %v540 = vld [vmem:[%s3 + $0x40] sm:$0xff]
      %v541 = vld [vmem:[%s3 + $0x48] sm:$0xff]
      %v542 = vld [vmem:[%s3 + $0x50] sm:$0xff]
      %v543 = vld [vmem:[%s3 + $0x58] sm:$0xff]
      %v544 = vld [vmem:[%s3 + $0x60] sm:$0xff]
      %v545 = vld [vmem:[%s3 + $0x68] sm:$0xff]
      %v546 = vld [vmem:[%s3 + $0x70] sm:$0xff]
      %v547 = vld [vmem:[%s3 + $0x78] sm:$0xff]
      %v548 = vld [vmem:[%s4] sm:$0x1]
      %v550 = vlaneseq
      %v551 = vshrl.u32 %v550, 7
      %v552 = vsub.s32 0, %v551
      %v553 = vrot.slane %v548, %v552
      %555 = vmatprep.subr.mxu0 0.0
      %556 = vmatpush1.msra.mxu0 %v532
      %557 = vmatprep.subr.mxu0 0.0
      %558 = vmatpush1.msra.mxu0 %v533
      %559 = vmatprep.subr.mxu0 0.0
      %560 = vmatpush1.msra.mxu0 %v534
      %561 = vmatprep.subr.mxu0 0.0
      %562 = vmatpush1.msra.mxu0 %v535
      %563 = vmatprep.subr.mxu0 0.0
      %564 = vmatpush1.msra.mxu0 %v536
      %565 = vmatprep.subr.mxu0 0.0
      %566 = vmatpush1.msra.mxu0 %v537
      %567 = vmatprep.subr.mxu0 0.0
      %568 = vmatpush1.msra.mxu0 %v538
      %569 = vmatprep.subr.mxu0 0.0
      %570 = vmatpush1.msra.mxu0 %v539
      %571 = vmatprep.subr.mxu0 0.0
      %572 = vmatpush1.msra.mxu0 %v540
      %573 = vmatprep.subr.mxu0 0.0
      %574 = vmatpush1.msra.mxu0 %v541
      %575 = vmatprep.subr.mxu0 0.0
      %576 = vmatpush1.msra.mxu0 %v542
      %577 = vmatprep.subr.mxu0 0.0
      %578 = vmatpush1.msra.mxu0 %v543
      %579 = vmatprep.subr.mxu0 0.0
      %580 = vmatpush1.msra.mxu0 %v544
      %581 = vmatprep.subr.mxu0 0.0
      %582 = vmatpush1.msra.mxu0 %v545
      %583 = vmatprep.subr.mxu0 0.0
      %584 = vmatpush1.msra.mxu0 %v546
      %585 = vmatprep.subr.mxu0 0.0
      %586 = vmatpush1.msra.mxu0 %v547
      %587 = vmatprep.subr.mxu0 0.0
      %588 = vmatpush1.msra.mxu0 0.0
      %589 = vmatprep.subr.mxu0 0.0
      %590 = vmatpush1.msra.mxu0 0.0
      %591 = vmatprep.subr.mxu0 0.0
      %592 = vmatpush1.msra.mxu0 0.0
      %593 = vmatprep.subr.mxu0 0.0
      %594 = vmatpush1.msra.mxu0 0.0
      %595 = vmatprep.subr.mxu0 0.0
      %596 = vmatpush1.msra.mxu0 0.0
      %597 = vmatprep.subr.mxu0 0.0
      %598 = vmatpush1.msra.mxu0 0.0
      %599 = vmatprep.subr.mxu0 0.0
      %600 = vmatpush1.msra.mxu0 0.0
      %601 = vmatprep.subr.mxu0 0.0
      %602 = vmatpush1.msra.mxu0 0.0
      %603 = vmatprep.subr.mxu0 0.0
      %604 = vmatpush1.msra.mxu0 0.0
      %605 = vmatprep.subr.mxu0 0.0
      %606 = vmatpush1.msra.mxu0 0.0
      %607 = vmatprep.subr.mxu0 0.0
      %608 = vmatpush1.msra.mxu0 0.0
      %609 = vmatprep.subr.mxu0 0.0
      %610 = vmatpush1.msra.mxu0 0.0
      %611 = vmatprep.subr.mxu0 0.0
      %612 = vmatpush1.msra.mxu0 0.0
      %613 = vmatprep.subr.mxu0 0.0
      %614 = vmatpush1.msra.mxu0 0.0
      %615 = vmatprep.subr.mxu0 0.0
      %616 = vmatpush1.msra.mxu0 0.0
      %617 = vmatprep.subr.mxu0 0.0
      %618 = vmatpush1.msra.mxu0 0.0
      %619 = vmatprep.mubr.f32.mxu0 0.0
      %620 = vmatmul.mubr.f32.gmra.mrb[0].mxu0 %v516
      %v621 = vpop.f32.mrb[0].mxu0
      %v622 = vadd.f32 %v553, %v621
      %v623 = vpop.f32.mrb[0].mxu0
      %624 = vmatprep.mubr.f32.mxu0 0.0
      %625 = vmatmul.mubr.f32.gmra.mrb[0].mxu0 %v517
      %v626 = vpop.f32.mrb[0].mxu0
      %v627 = vadd.f32 %v553, %v626
      %v628 = vpop.f32.mrb[0].mxu0
      %629 = vmatprep.mubr.f32.mxu0 0.0
      %630 = vmatmul.mubr.f32.gmra.mrb[0].mxu0 %v518
      %v631 = vpop.f32.mrb[0].mxu0
      %v632 = vadd.f32 %v553, %v631
      %v633 = vpop.f32.mrb[0].mxu0
      %634 = vmatprep.mubr.f32.mxu0 0.0
      %635 = vmatmul.mubr.f32.gmra.mrb[0].mxu0 %v519
      %v636 = vpop.f32.mrb[0].mxu0
      %v637 = vadd.f32 %v553, %v636
      %v638 = vpop.f32.mrb[0].mxu0
      %639 = vmatprep.mubr.f32.mxu0 0.0
      %640 = vmatmul.mubr.f32.gmra.mrb[0].mxu0 %v520
      %v641 = vpop.f32.mrb[0].mxu0
      %v642 = vadd.f32 %v553, %v641
      %v643 = vpop.f32.mrb[0].mxu0
      %644 = vmatprep.mubr.f32.mxu0 0.0
      %645 = vmatmul.mubr.f32.gmra.mrb[0].mxu0 %v521
      %v646 = vpop.f32.mrb[0].mxu0
      %v647 = vadd.f32 %v553, %v646
      %v648 = vpop.f32.mrb[0].mxu0
      %649 = vmatprep.mubr.f32.mxu0 0.0
      %650 = vmatmul.mubr.f32.gmra.mrb[0].mxu0 %v522
      %v651 = vpop.f32.mrb[0].mxu0
      %v652 = vadd.f32 %v553, %v651
      %v653 = vpop.f32.mrb[0].mxu0
      %654 = vmatprep.mubr.f32.mxu0 0.0
      %655 = vmatmul.mubr.f32.gmra.mrb[0].mxu0 %v523
      %v656 = vpop.f32.mrb[0].mxu0
      %v657 = vadd.f32 %v553, %v656
      %v658 = vpop.f32.mrb[0].mxu0
      %659 = vmatprep.mubr.f32.mxu0 0.0
      %660 = vmatmul.mubr.f32.gmra.mrb[0].mxu0 %v524
      %v661 = vpop.f32.mrb[0].mxu0
      %v662 = vadd.f32 %v553, %v661
      %v663 = vpop.f32.mrb[0].mxu0
      %664 = vmatprep.mubr.f32.mxu0 0.0
      %665 = vmatmul.mubr.f32.gmra.mrb[0].mxu0 %v525
      %v666 = vpop.f32.mrb[0].mxu0
      %v667 = vadd.f32 %v553, %v666
      %v668 = vpop.f32.mrb[0].mxu0
      %669 = vmatprep.mubr.f32.mxu0 0.0
      %670 = vmatmul.mubr.f32.gmra.mrb[0].mxu0 %v526
      %v671 = vpop.f32.mrb[0].mxu0
      %v672 = vadd.f32 %v553, %v671
      %v673 = vpop.f32.mrb[0].mxu0
      %674 = vmatprep.mubr.f32.mxu0 0.0
      %675 = vmatmul.mubr.f32.gmra.mrb[0].mxu0 %v527
      %v676 = vpop.f32.mrb[0].mxu0
      %v677 = vadd.f32 %v553, %v676
      %v678 = vpop.f32.mrb[0].mxu0
      %679 = vmatprep.mubr.f32.mxu0 0.0
      %680 = vmatmul.mubr.f32.gmra.mrb[0].mxu0 %v528
      %v681 = vpop.f32.mrb[0].mxu0
      %v682 = vadd.f32 %v553, %v681
      %v683 = vpop.f32.mrb[0].mxu0
      %684 = vmatprep.mubr.f32.mxu0 0.0
      %685 = vmatmul.mubr.f32.gmra.mrb[0].mxu0 %v529
      %v686 = vpop.f32.mrb[0].mxu0
      %v687 = vadd.f32 %v553, %v686
      %v688 = vpop.f32.mrb[0].mxu0
      %689 = vmatprep.mubr.f32.mxu0 0.0
      %690 = vmatmul.mubr.f32.gmra.mrb[0].mxu0 %v530
      %v691 = vpop.f32.mrb[0].mxu0
      %v692 = vadd.f32 %v553, %v691
      %v693 = vpop.f32.mrb[0].mxu0
      %694 = vmatprep.mubr.f32.mxu0 0.0
      %695 = vmatmul.mubr.f32.gmra.mrb[0].mxu0 %v531
      %v696 = vpop.f32.mrb[0].mxu0
      %v697 = vadd.f32 %v553, %v696
      %v698 = vpop.f32.mrb[0].mxu0
      %699 = vdwg.mxu0
      %v700 = vmax.f32 %v622, 0.0
      %v701 = vmax.f32 %v627, 0.0
      %v702 = vmax.f32 %v632, 0.0
      %v703 = vmax.f32 %v637, 0.0
      %v704 = vmax.f32 %v642, 0.0
      %v705 = vmax.f32 %v647, 0.0
      %v706 = vmax.f32 %v652, 0.0
      %v707 = vmax.f32 %v657, 0.0
      %v708 = vmax.f32 %v662, 0.0
      %v709 = vmax.f32 %v667, 0.0
      %v710 = vmax.f32 %v672, 0.0
      %v711 = vmax.f32 %v677, 0.0
      %v712 = vmax.f32 %v682, 0.0
      %v713 = vmax.f32 %v687, 0.0
      %v714 = vmax.f32 %v692, 0.0
      %v715 = vmax.f32 %v697, 0.0
      %v716 = vld [vmem:[%s5] sm:$0xff]
      %v717 = vld [vmem:[%s5 + $0x8] sm:$0xff]
      %v718 = vld [vmem:[%s5 + $0x10] sm:$0xff]
      %v719 = vld [vmem:[%s5 + $0x18] sm:$0xff]
      %v720 = vld [vmem:[%s5 + $0x20] sm:$0xff]
      %v721 = vld [vmem:[%s5 + $0x28] sm:$0xff]
      %v722 = vld [vmem:[%s5 + $0x30] sm:$0xff]
      %v723 = vld [vmem:[%s5 + $0x38] sm:$0xff]
      %v724 = vld [vmem:[%s5 + $0x40] sm:$0xff]
      %v725 = vld [vmem:[%s5 + $0x48] sm:$0xff]
      %v726 = vld [vmem:[%s5 + $0x50] sm:$0xff]
      %v727 = vld [vmem:[%s5 + $0x58] sm:$0xff]
      %v728 = vld [vmem:[%s5 + $0x60] sm:$0xff]
      %v729 = vld [vmem:[%s5 + $0x68] sm:$0xff]
      %v730 = vld [vmem:[%s5 + $0x70] sm:$0xff]
      %v731 = vld [vmem:[%s5 + $0x78] sm:$0xff]
      %v732 = vld [vmem:[%s6] sm:$0x1]
      %v734 = vlaneseq
      %v735 = vshrl.u32 %v734, 7
      %v736 = vsub.s32 0, %v735
      %v737 = vrot.slane %v732, %v736
      %739 = vmatprep.subr.mxu0 0.0
      %740 = vmatpush1.msra.mxu0 %v716
      %741 = vmatprep.subr.mxu0 0.0
      %742 = vmatpush1.msra.mxu0 %v717
      %743 = vmatprep.subr.mxu0 0.0
      %744 = vmatpush1.msra.mxu0 %v718
      %745 = vmatprep.subr.mxu0 0.0
      %746 = vmatpush1.msra.mxu0 %v719
      %747 = vmatprep.subr.mxu0 0.0
      %748 = vmatpush1.msra.mxu0 %v720
      %749 = vmatprep.subr.mxu0 0.0
      %750 = vmatpush1.msra.mxu0 %v721
      %751 = vmatprep.subr.mxu0 0.0
      %752 = vmatpush1.msra.mxu0 %v722
      %753 = vmatprep.subr.mxu0 0.0
      %754 = vmatpush1.msra.mxu0 %v723
      %755 = vmatprep.subr.mxu0 0.0
      %756 = vmatpush1.msra.mxu0 %v724
      %757 = vmatprep.subr.mxu0 0.0
      %758 = vmatpush1.msra.mxu0 %v725
      %759 = vmatprep.subr.mxu0 0.0
      %760 = vmatpush1.msra.mxu0 %v726
      %761 = vmatprep.subr.mxu0 0.0
      %762 = vmatpush1.msra.mxu0 %v727
      %763 = vmatprep.subr.mxu0 0.0
      %764 = vmatpush1.msra.mxu0 %v728
      %765 = vmatprep.subr.mxu0 0.0
      %766 = vmatpush1.msra.mxu0 %v729
      %767 = vmatprep.subr.mxu0 0.0
      %768 = vmatpush1.msra.mxu0 %v730
      %769 = vmatprep.subr.mxu0 0.0
      %770 = vmatpush1.msra.mxu0 %v731
      %771 = vmatprep.subr.mxu0 0.0
      %772 = vmatpush1.msra.mxu0 0.0
      %773 = vmatprep.subr.mxu0 0.0
      %774 = vmatpush1.msra.mxu0 0.0
      %775 = vmatprep.subr.mxu0 0.0
      %776 = vmatpush1.msra.mxu0 0.0
      %777 = vmatprep.subr.mxu0 0.0
      %778 = vmatpush1.msra.mxu0 0.0
      %779 = vmatprep.subr.mxu0 0.0
      %780 = vmatpush1.msra.mxu0 0.0
      %781 = vmatprep.subr.mxu0 0.0
      %782 = vmatpush1.msra.mxu0 0.0
      %783 = vmatprep.subr.mxu0 0.0
      %784 = vmatpush1.msra.mxu0 0.0
      %785 = vmatprep.subr.mxu0 0.0
      %786 = vmatpush1.msra.mxu0 0.0
      %787 = vmatprep.subr.mxu0 0.0
      %788 = vmatpush1.msra.mxu0 0.0
      %789 = vmatprep.subr.mxu0 0.0
      %790 = vmatpush1.msra.mxu0 0.0
      %791 = vmatprep.subr.mxu0 0.0
      %792 = vmatpush1.msra.mxu0 0.0
      %793 = vmatprep.subr.mxu0 0.0
      %794 = vmatpush1.msra.mxu0 0.0
      %795 = vmatprep.subr.mxu0 0.0
      %796 = vmatpush1.msra.mxu0 0.0
      %797 = vmatprep.subr.mxu0 0.0
      %798 = vmatpush1.msra.mxu0 0.0
      %799 = vmatprep.subr.mxu0 0.0
      %800 = vmatpush1.msra.mxu0 0.0
      %801 = vmatprep.subr.mxu0 0.0
      %802 = vmatpush1.msra.mxu0 0.0
      %803 = vmatprep.mubr.f32.mxu0 0.0
      %804 = vmatmul.mubr.f32.gmra.mrb[0].mxu0 %v700
      %v805 = vpop.f32.mrb[0].mxu0
      %v806 = vadd.f32 %v737, %v805
      %v807 = vpop.f32.mrb[0].mxu0
      %808 = vmatprep.mubr.f32.mxu0 0.0
      %809 = vmatmul.mubr.f32.gmra.mrb[0].mxu0 %v701
      %v810 = vpop.f32.mrb[0].mxu0
      %v811 = vadd.f32 %v737, %v810
      %v812 = vpop.f32.mrb[0].mxu0
      %813 = vmatprep.mubr.f32.mxu0 0.0
      %814 = vmatmul.mubr.f32.gmra.mrb[0].mxu0 %v702
      %v815 = vpop.f32.mrb[0].mxu0
      %v816 = vadd.f32 %v737, %v815
      %v817 = vpop.f32.mrb[0].mxu0
      %818 = vmatprep.mubr.f32.mxu0 0.0
      %819 = vmatmul.mubr.f32.gmra.mrb[0].mxu0 %v703
      %v820 = vpop.f32.mrb[0].mxu0
      %v821 = vadd.f32 %v737, %v820
      %v822 = vpop.f32.mrb[0].mxu0
      %823 = vmatprep.mubr.f32.mxu0 0.0
      %824 = vmatmul.mubr.f32.gmra.mrb[0].mxu0 %v704
      %v825 = vpop.f32.mrb[0].mxu0
      %v826 = vadd.f32 %v737, %v825
      %v827 = vpop.f32.mrb[0].mxu0
      %828 = vmatprep.mubr.f32.mxu0 0.0
      %829 = vmatmul.mubr.f32.gmra.mrb[0].mxu0 %v705
      %v830 = vpop.f32.mrb[0].mxu0
      %v831 = vadd.f32 %v737, %v830
      %v832 = vpop.f32.mrb[0].mxu0
      %833 = vmatprep.mubr.f32.mxu0 0.0
      %834 = vmatmul.mubr.f32.gmra.mrb[0].mxu0 %v706
      %v835 = vpop.f32.mrb[0].mxu0
      %v836 = vadd.f32 %v737, %v835
      %v837 = vpop.f32.mrb[0].mxu0
      %838 = vmatprep.mubr.f32.mxu0 0.0
      %839 = vmatmul.mubr.f32.gmra.mrb[0].mxu0 %v707
      %v840 = vpop.f32.mrb[0].mxu0
      %v841 = vadd.f32 %v737, %v840
      %v842 = vpop.f32.mrb[0].mxu0
      %843 = vmatprep.mubr.f32.mxu0 0.0
      %844 = vmatmul.mubr.f32.gmra.mrb[0].mxu0 %v708
      %v845 = vpop.f32.mrb[0].mxu0
      %v846 = vadd.f32 %v737, %v845
      %v847 = vpop.f32.mrb[0].mxu0
      %848 = vmatprep.mubr.f32.mxu0 0.0
      %849 = vmatmul.mubr.f32.gmra.mrb[0].mxu0 %v709
      %v850 = vpop.f32.mrb[0].mxu0
      %v851 = vadd.f32 %v737, %v850
      %v852 = vpop.f32.mrb[0].mxu0
      %853 = vmatprep.mubr.f32.mxu0 0.0
      %854 = vmatmul.mubr.f32.gmra.mrb[0].mxu0 %v710
      %v855 = vpop.f32.mrb[0].mxu0
      %v856 = vadd.f32 %v737, %v855
      %v857 = vpop.f32.mrb[0].mxu0
      %858 = vmatprep.mubr.f32.mxu0 0.0
      %859 = vmatmul.mubr.f32.gmra.mrb[0].mxu0 %v711
      %v860 = vpop.f32.mrb[0].mxu0
      %v861 = vadd.f32 %v737, %v860
      %v862 = vpop.f32.mrb[0].mxu0
      %863 = vmatprep.mubr.f32.mxu0 0.0
      %864 = vmatmul.mubr.f32.gmra.mrb[0].mxu0 %v712
      %v865 = vpop.f32.mrb[0].mxu0
      %v866 = vadd.f32 %v737, %v865
      %v867 = vpop.f32.mrb[0].mxu0
      %868 = vmatprep.mubr.f32.mxu0 0.0
      %869 = vmatmul.mubr.f32.gmra.mrb[0].mxu0 %v713
      %v870 = vpop.f32.mrb[0].mxu0
      %v871 = vadd.f32 %v737, %v870
      %v872 = vpop.f32.mrb[0].mxu0
      %873 = vmatprep.mubr.f32.mxu0 0.0
      %874 = vmatmul.mubr.f32.gmra.mrb[0].mxu0 %v714
      %v875 = vpop.f32.mrb[0].mxu0
      %v876 = vadd.f32 %v737, %v875
      %v877 = vpop.f32.mrb[0].mxu0
      %878 = vmatprep.mubr.f32.mxu0 0.0
      %879 = vmatmul.mubr.f32.gmra.mrb[0].mxu0 %v715
      %v880 = vpop.f32.mrb[0].mxu0
      %v881 = vadd.f32 %v737, %v880
      %v882 = vpop.f32.mrb[0].mxu0
      %883 = vdwg.mxu0
      %v884 = vadd.f32 %v806, %v282
      %v885 = vadd.f32 %v811, %v283
      %v886 = vadd.f32 %v816, %v284
      %v887 = vadd.f32 %v821, %v285
      %v888 = vadd.f32 %v826, %v286
      %v889 = vadd.f32 %v831, %v287
      %v890 = vadd.f32 %v836, %v288
      %v891 = vadd.f32 %v841, %v289
      %v892 = vadd.f32 %v846, %v290
      %v893 = vadd.f32 %v851, %v291
      %v894 = vadd.f32 %v856, %v292
      %v895 = vadd.f32 %v861, %v293
      %v896 = vadd.f32 %v866, %v294
      %v897 = vadd.f32 %v871, %v295
      %v898 = vadd.f32 %v876, %v296
      %v899 = vadd.f32 %v881, %v297
      %900 = vst.msk [vmem:[%s280] sm:$0xff] %vm322, %v884
      %901 = vst.msk [vmem:[%s280 + $0x8] sm:$0xff] %vm322, %v885
      %902 = vst.msk [vmem:[%s280 + $0x10] sm:$0xff] %vm322, %v886
      %903 = vst.msk [vmem:[%s280 + $0x18] sm:$0xff] %vm322, %v887
      %904 = vst.msk [vmem:[%s280 + $0x20] sm:$0xff] %vm322, %v888
      %905 = vst.msk [vmem:[%s280 + $0x28] sm:$0xff] %vm322, %v889
      %906 = vst.msk [vmem:[%s280 + $0x30] sm:$0xff] %vm322, %v890
      %907 = vst.msk [vmem:[%s280 + $0x38] sm:$0xff] %vm322, %v891
      %908 = vst.msk [vmem:[%s280 + $0x40] sm:$0xff] %vm322, %v892
      %909 = vst.msk [vmem:[%s280 + $0x48] sm:$0xff] %vm322, %v893
      %910 = vst.msk [vmem:[%s280 + $0x50] sm:$0xff] %vm322, %v894
      %911 = vst.msk [vmem:[%s280 + $0x58] sm:$0xff] %vm322, %v895
      %912 = vst.msk [vmem:[%s280 + $0x60] sm:$0xff] %vm322, %v896
      %913 = vst.msk [vmem:[%s280 + $0x68] sm:$0xff] %vm322, %v897
      %914 = vst.msk [vmem:[%s280 + $0x70] sm:$0xff] %vm322, %v898
      %915 = vst.msk [vmem:[%s280 + $0x78] sm:$0xff] %vm322, %v899
      %s916 = smul.u32 16, %s18
      %p917 = scmp.lt.s32.totalorder %s916, 31
      %s918 = scalar_select %p917, %s916, 31
      %s919 = smul.addr %s918, 8
      %s920 = scalar_lea.vmem %s7, %s919
      // Predicated region
      $region49: #{tpu_custom_call.1} parent=47 // pred_check
        %p921 = pneg %p188
      $region50: #{tpu_custom_call.1} parent=47 // pred_check_branch
        %923 = sbr.rel (%p921) target = $region52
      $region51: #{tpu_custom_call.1} parent=47 // pred_region
        %s924 = smul.u32 16, %s18
      $region52: #{tpu_custom_call.1} parent=47 // pred_fallthru
        _
    $region48: #{tpu_custom_call.1} parent=5 // pred_fallthru
      _
    %p925 = scmp.le.s32.totalorder 2, %s13
    // Predicated region
    $region53: #{tpu_custom_call.1} parent=5 // pred_check
      %p926 = pneg %p925
    $region54: #{tpu_custom_call.1} parent=5 // pred_check_branch
      %928 = sbr.rel (%p926) target = $region56
    $region55: #{tpu_custom_call.1} parent=5 // pred_region
      %s929 = ssub.s32 %s13, 2
      // Predicated region
      $region57: #{tpu_custom_call.1} parent=55 // pred_check
        %p930 = pneg %p194
      $region58: #{tpu_custom_call.1} parent=55 // pred_check_branch
        %932 = sbr.rel (%p930) target = $region60
      $region59: #{tpu_custom_call.1} parent=55 // pred_region
        %s933 = smul.u32 16, %s19
        %p934 = scmp.lt.s32.totalorder %s933, 31
        %s935 = scalar_select %p934, %s933, 31
        %s936 = smul.addr %s935, 8
        %s937 = scalar_lea.vmem %s7, %s936
      $region60: #{tpu_custom_call.1} parent=55 // pred_fallthru
        _
    $region56: #{tpu_custom_call.1} parent=5 // pred_fallthru
      _
  $region6: #{tpu_custom_call.1} parent=0 // loop_footer
    %s17 = sadd.s32 1, %s13
  $region7: #{tpu_custom_call.1} parent=0 // loop_footer_branch
    %12 = sbr.rel target = $region3
  $region8: #{tpu_custom_call.1} parent=0 // loop_exit
    _

</llo_original>
